<compile_context>
chip_gen: v6e
topology: v6e:2x2x1
jax: 0.10.0
libtpu: 0.0.40
codegen_flags: <defaults>
</compile_context>

<pallas_src>
import jax
import jax.numpy as jnp
from jax.experimental import pallas as pl
from jax.experimental.pallas import tpu as pltpu


# ----------------------------------------------------------------------------
# Fused decoder kernel.  Grid = (stream, batch, layer):
#   stream 0 = sent path, stream 1 = act path (weights stacked on axis 0);
#   the layer axis is "arbitrary" and carries e / h / h0 in VMEM scratch.
# ----------------------------------------------------------------------------
def _decoder_kernel(
    x_ref, p_ref, adj_ref, valid_ref, pos_ref, ttp_ref,
    wt_ref, bt_ref,
    wp_ref, wpos_ref, w2_ref, b2_ref,
    we_ref, wh_ref, bg_ref,
    wf_ref, bf_ref,
    out_ref,
    h0_s, h_s, e_s,
):
    f32 = jnp.float32
    bf16 = jnp.bfloat16
    N = p_ref.shape[0]
    H = we_ref.shape[-1]
    H2 = 2 * H
    l = pl.program_id(2)

    # -- layer 0 only: transfer linear + edge-embedding (A_generator) MLP ----
    @pl.when(l == 0)
    def _init():
        h0 = (
            jnp.dot(x_ref[...].astype(bf16), wt_ref[...], preferred_element_type=f32)
            + bt_ref[...]
        )                                                          # (N, H) f32
        h0_s[...] = h0
        h_s[...] = h0

        # Linear1(em), em = [p_i, p_j, pos, type], computed as partial matmuls.
        pw = jnp.dot(p_ref[...].astype(bf16), wp_ref[...],
                     preferred_element_type=f32)                   # (N, 4H)
        pi = pw[:, :H2]
        pj = pw[:, H2:]

        pos_c = jnp.dot(pos_ref[...], wpos_ref[...],
                        preferred_element_type=f32)                # (N*N, 2H)

        # type branch: 3-row pre-projected table (Linear1 bias folded in),
        # selected arithmetically (2 small compares + 2 broadcast FMAs).
        ttp = ttp_ref[...]                                         # (3, 2H) f32
        t0 = ttp[0:1, :]
        d10 = ttp[1:2, :] - t0
        d20 = ttp[2:3, :] - t0
        adj = adj_ref[...]                                         # (N, N) int32
        a1 = (adj == 1).astype(f32)[:, :, None]
        a2 = (adj == 2).astype(f32)[:, :, None]

        h1 = (pos_c.reshape(N, N, H2)
              + t0 + a1 * d10 + a2 * d20
              + pi[:, None, :] + pj[None, :, :])
        h1 = jnp.maximum(h1, 0.0).reshape(N * N, H2).astype(bf16)
        e_s[...] = (
            jnp.dot(h1, w2_ref[...], preferred_element_type=f32) + b2_ref[...]
        )                                                          # (N*N, H) f32

    # -- one residual gated-GCN layer (current grid layer l) ------------------
    b = bg_ref[...]                                                # (3, H) f32
    b_e = b[0:1, :]
    b_n1 = b[1:2, :]
    b_n2 = b[2:3, :]

    h = h_s[...]                                                   # (N, H) f32
    # all four node projections in one wide (H, 4H) matmul
    hw = jnp.dot(h.astype(bf16), wh_ref[...], preferred_element_type=f32)
    h_src = hw[:, 0 * H:1 * H]
    h_dst = hw[:, 1 * H:2 * H]
    h_n1 = hw[:, 2 * H:3 * H]
    vh = hw[:, 3 * H:4 * H] + b_n2

    e = e_s[...]                                                   # (N*N, H) f32
    e_w = jnp.dot(e.astype(bf16), we_ref[...], preferred_element_type=f32)
    pair = (h_src[:, None, :] + h_dst[None, :, :] + b_e).reshape(N * N, H)
    e_hat = e_w + pair                                             # (N*N, H)
    e_s[...] = e + jnp.maximum(e_hat, 0.0)

    # sigmoid via one tanh EUP push; mask invalid (padded) columns j.
    sig = 0.5 * jnp.tanh(0.5 * e_hat) + 0.5
    valid3 = valid_ref[...][None, :, :]                            # (1, N, 1)
    g3 = sig.reshape(N, N, H) * valid3                             # (N, N, H)
    agg = jnp.sum(g3 * vh[None, :, :], axis=1)                     # (N, H)
    denom = jnp.sum(g3, axis=1) + 1e-20                            # (N, H)
    h_hat = h_n1 + b_n1 + agg * pl.reciprocal(denom, approx=True)
    h_s[...] = h + jnp.maximum(h_hat, 0.0)

    # -- last layer only: residual + final linear (lane-dense, 128-wide) ------
    @pl.when(l == pl.num_programs(2) - 1)
    def _final():
        out_ref[...] = (
            jnp.dot((h0_s[...] + h_s[...]).astype(bf16), wf_ref[...],
                    preferred_element_type=f32)
            + bf_ref[...]
        )


# ----------------------------------------------------------------------------
# Parameter init (deterministic, PyTorch-Linear-style uniform) -- "natural"
# per-module layout, then packed into stream/layer-stacked fused arrays.
# ----------------------------------------------------------------------------
def _init_linear(key, fan_in, fan_out):
    k1, k2 = jax.random.split(key)
    bound = float(fan_in) ** -0.5
    w = jax.random.uniform(k1, (fan_in, fan_out), jnp.float32, -bound, bound)
    b = jax.random.uniform(k2, (1, fan_out), jnp.float32, -bound, bound)
    return w, b


def init_params(key, num_sent, num_act, input_dim, hidden_dim, num_layer):
    H = hidden_dim
    C = num_sent + num_act
    F = 2 * C + 2 * H          # A_generator Linear1 input dim (split into pieces)
    keys = iter(jax.random.split(key, 64))

    params = {}
    params["ts_w"], params["ts_b"] = _init_linear(next(keys), input_dim, H)
    params["ta_w"], params["ta_b"] = _init_linear(next(keys), input_dim, H)
    params["fs_w"], params["fs_b"] = _init_linear(next(keys), H, num_sent)
    params["fa_w"], params["fa_b"] = _init_linear(next(keys), H, num_act)
    params["pos_table"] = jax.random.normal(next(keys), (200, H), jnp.float32)
    params["type_table"] = jax.random.normal(next(keys), (3, H), jnp.float32)

    def init_gen(k):
        ks = jax.random.split(k, 7)
        bound1 = float(F) ** -0.5
        w_pi = jax.random.uniform(ks[0], (C, 2 * H), jnp.float32, -bound1, bound1)
        w_pj = jax.random.uniform(ks[1], (C, 2 * H), jnp.float32, -bound1, bound1)
        w_pos = jax.random.uniform(ks[2], (H, 2 * H), jnp.float32, -bound1, bound1)
        w_typ = jax.random.uniform(ks[3], (H, 2 * H), jnp.float32, -bound1, bound1)
        b1 = jax.random.uniform(ks[4], (1, 2 * H), jnp.float32, -bound1, bound1)
        w2, b2 = _init_linear(ks[5], 2 * H, H)
        return (w_pi, w_pj, w_pos, w_typ, b1, w2, b2)

    params["gen_s"] = init_gen(next(keys))
    params["gen_a"] = init_gen(next(keys))

    def init_gcn_layer(k):
        ks = jax.random.split(k, 5)
        w_e, b_e = _init_linear(ks[0], H, H)
        w_src, _ = _init_linear(ks[1], H, H)
        w_dst, _ = _init_linear(ks[2], H, H)
        w_n1, b_n1 = _init_linear(ks[3], H, H)
        w_n2, b_n2 = _init_linear(ks[4], H, H)
        return (w_e, w_src, w_dst, b_e, w_n1, b_n1, w_n2, b_n2)

    params["sent_layers"] = [init_gcn_layer(next(keys)) for _ in range(num_layer)]
    params["act_layers"] = [init_gcn_layer(next(keys)) for _ in range(num_layer)]
    return params


def pack_params(params, num_sent, num_act, hidden_dim):
    """Stack sent/act streams on axis 0, fuse small matmul weights, cast to bf16."""
    H = hidden_dim
    ns, na = num_sent, num_act
    bf16 = jnp.bfloat16
    f32 = jnp.float32
    # lane-dense output width (multiple of 128)
    out_pad = 128 * (-(-(max(ns, na)) // 128))

    ws_pi, ws_pj, ws_pos, ws_typ, bs1, ws2, bs2 = params["gen_s"]
    wa_pi, wa_pj, wa_pos, wa_typ, ba1, wa2, ba2 = params["gen_a"]

    # 3-row projected type table with the Linear1 bias folded in (exact, f32).
    ttab = params["type_table"]
    ttp = jnp.stack([ttab @ ws_typ + bs1, ttab @ wa_typ + ba1]).astype(f32)  # (2,3,2H)

    def layer_pack(layers):
        w_e = jnp.stack([lp[0] for lp in layers])                            # (L,H,H)
        w_h = jnp.stack(
            [jnp.concatenate([lp[1], lp[2], lp[4], lp[6]], axis=1) for lp in layers]
        )                                                                    # (L,H,4H)
        b = jnp.stack(
            [jnp.concatenate([lp[3], lp[5], lp[7]], axis=0) for lp in layers]
        )                                                                    # (L,3,H)
        return w_e, w_h, b

    we_s, wh_s, bg_s = layer_pack(params["sent_layers"])
    we_a, wh_a, bg_a = layer_pack(params["act_layers"])

    # lane-dense final linear: each stream's outputs start at column 0,
    # padded with zero columns up to out_pad (wrapper slices :ns / :na).
    w_fin = jnp.zeros((2, H, out_pad), f32)
    w_fin = w_fin.at[0, :, :ns].set(params["fs_w"])
    w_fin = w_fin.at[1, :, :na].set(params["fa_w"])
    b_fin = jnp.zeros((2, 1, out_pad), f32)
    b_fin = b_fin.at[0, 0, :ns].set(params["fs_b"][0])
    b_fin = b_fin.at[1, 0, :na].set(params["fa_b"][0])

    return dict(
        wt=jnp.stack([params["ts_w"], params["ta_w"]]).astype(bf16),
        bt=jnp.stack([params["ts_b"], params["ta_b"]]).astype(f32),
        wp=jnp.stack([
            jnp.concatenate([ws_pi, ws_pj], axis=1),
            jnp.concatenate([wa_pi, wa_pj], axis=1),
        ]).astype(bf16),
        wpos=jnp.stack([ws_pos, wa_pos]).astype(bf16),
        ttp=ttp,
        w2=jnp.stack([ws2, wa2]).astype(bf16),
        b2=jnp.stack([bs2, ba2]).astype(f32),
        we=jnp.stack([we_s, we_a]).astype(bf16),
        wh=jnp.stack([wh_s, wh_a]).astype(bf16),
        bg=jnp.stack([bg_s, bg_a]).astype(f32),
        wf=w_fin.astype(bf16),
        bf=b_fin.astype(f32),
    )


def precompute_pos_em(pos_table, seq_len, max_len=100):
    """Positional-embedding gather done ONCE (depends only on N / max_len)."""
    pos_m = jnp.arange(seq_len)[None, :] - jnp.arange(seq_len)[:, None] + max_len
    return pos_table[pos_m].reshape(seq_len * seq_len, -1).astype(jnp.bfloat16)


# ----------------------------------------------------------------------------
# Full forward: cheap input assembly in XLA glue, one fused Pallas kernel.
# ----------------------------------------------------------------------------
def confidence_decoder_forward(
    packed, sent_x, act_x, sent_logits, act_logits, len_list, adj, pos_em_flat,
    num_sent, num_act, hidden_dim,
):
    B, N, in_dim = sent_x.shape
    H = hidden_dim
    ns, na = num_sent, num_act
    C = ns + na
    L = packed["we"].shape[1]
    OUTP = packed["wf"].shape[-1]
    f32 = jnp.float32

    # glue: p concat, stream stacking, adj diagonal, column-valid mask
    p = jnp.concatenate([sent_logits, act_logits], axis=-1)            # (B, N, C)
    x_in = jnp.stack([sent_x, act_x], axis=0)                          # (2, B, N, in)
    idx = jnp.arange(N)
    adj = adj.at[:, idx, idx].set(2)
    valid = (jnp.arange(N)[None, :] < len_list[:, None]).astype(f32)[:, :, None]  # (B,N,1)

    sq = pl.Squeezed

    def s_only(nd):
        return lambda s, b, l: (s,) + (0,) * (nd - 1)

    def b_only(nd):
        return lambda s, b, l: (b,) + (0,) * (nd - 1)

    def const(nd):
        return lambda s, b, l: (0,) * nd

    def s_layer(nd):
        return lambda s, b, l: (s, l) + (0,) * (nd - 2)

    in_specs = [
        pl.BlockSpec((sq(), sq(), N, in_dim), lambda s, b, l: (s, b, 0, 0)),  # x_in
        pl.BlockSpec((sq(), N, C), b_only(3)),                                # p
        pl.BlockSpec((sq(), N, N), b_only(3)),                                # adj
        pl.BlockSpec((sq(), N, 1), b_only(3)),                                # valid
        pl.BlockSpec((N * N, H), const(2)),                                   # pos_em
        pl.BlockSpec((sq(), 3, 2 * H), s_only(3)),                            # ttp
        pl.BlockSpec((sq(), in_dim, H), s_only(3)),                           # wt
        pl.BlockSpec((sq(), 1, H), s_only(3)),                                # bt
        pl.BlockSpec((sq(), C, 4 * H), s_only(3)),                            # wp
        pl.BlockSpec((sq(), H, 2 * H), s_only(3)),                            # wpos
        pl.BlockSpec((sq(), 2 * H, H), s_only(3)),                            # w2
        pl.BlockSpec((sq(), 1, H), s_only(3)),                                # b2
        pl.BlockSpec((sq(), sq(), H, H), s_layer(4)),                         # we[l]
        pl.BlockSpec((sq(), sq(), H, 4 * H), s_layer(4)),                     # wh[l]
        pl.BlockSpec((sq(), sq(), 3, H), s_layer(4)),                         # bg[l]
        pl.BlockSpec((sq(), H, OUTP), s_only(3)),                             # wf
        pl.BlockSpec((sq(), 1, OUTP), s_only(3)),                             # bf
    ]
    out_spec = pl.BlockSpec((sq(), sq(), N, OUTP), lambda s, b, l: (s, b, 0, 0))

    # VMEM budget: edge-path live set + slack, capped at 85% of physical VMEM
    # (≈54 MiB on v7x, ≈108 MiB on v5e/v6e).
    NN = N * N
    est = (
        2 * NN * H * 2          # pos_em bf16 input, double-buffered
        + NN * H * 4            # e scratch (f32, single copy)
        + 8 * NN * H * 4        # per-layer f32 temporaries (e_w/e_hat/sig/g3/...)
        + 6 * NN * H * 4        # stage-0 temporaries at 2H width
        + (4 << 20)             # weights, node tensors, headroom
    )
    try:
        info = pltpu.get_tpu_info()
        phys = getattr(info, "vmem_capacity_bytes", None) or (128 << 20)
    except Exception:
        phys = 128 << 20
    vmem_limit = int(min(int(0.85 * phys), max(32 << 20, int(est * 1.3))))

    out = pl.pallas_call(
        _decoder_kernel,
        grid=(2, B, L),
        in_specs=in_specs,
        out_specs=out_spec,
        out_shape=jax.ShapeDtypeStruct((2, B, N, OUTP), f32),
        scratch_shapes=[
            pltpu.VMEM((N, H), f32),        # h0 (transfer output, residual)
            pltpu.VMEM((N, H), f32),        # h  (node features, carried over l)
            pltpu.VMEM((N * N, H), f32),    # e  (edge features, flat, carried)
        ],
        compiler_params=pltpu.CompilerParams(
            dimension_semantics=("parallel", "parallel", "arbitrary"),
            vmem_limit_bytes=vmem_limit,
        ),
    )(
        x_in, p, adj, valid, pos_em_flat, packed["ttp"],
        packed["wt"], packed["bt"],
        packed["wp"], packed["wpos"], packed["w2"], packed["b2"],
        packed["we"], packed["wh"], packed["bg"],
        packed["wf"], packed["bf"],
    )
    final_sent_logits = out[0, :, :, :ns]
    final_act_logits = out[1, :, :, :na]
    return final_sent_logits, final_act_logits


# ----------------------------------------------------------------------------
if __name__ == "__main__":
    B, N = 2, 8
    num_sent, num_act = 3, 5
    input_dim, hidden_dim = 16, 32
    nhead, num_layer, dropout_rate = 4, 2, 0.1   # nhead/dropout unused in eval forward
    max_len = 100

    key = jax.random.PRNGKey(0)
    k = jax.random.split(key, 6)
    sent_x = jax.random.normal(k[0], (B, N, input_dim), jnp.float32)
    act_x = jax.random.normal(k[1], (B, N, input_dim), jnp.float32)
    sent_logits = jax.random.normal(k[2], (B, N, num_sent), jnp.float32)
    act_logits = jax.random.normal(k[3], (B, N, num_act), jnp.float32)
    adj = jax.random.randint(k[4], (B, N, N), 0, 2, jnp.int32)
    len_list = jnp.array([8, 6], jnp.int32)

    params = init_params(k[5], num_sent, num_act, input_dim, hidden_dim, num_layer)
    packed = pack_params(params, num_sent, num_act, hidden_dim)
    pos_em_flat = precompute_pos_em(params["pos_table"], N, max_len)

    fs, fa = confidence_decoder_forward(
        packed, sent_x, act_x, sent_logits, act_logits, len_list, adj, pos_em_flat,
        num_sent, num_act, hidden_dim,
    )
    jax.block_until_ready((fs, fa))
    assert fs.shape == (B, N, num_sent) and fa.shape == (B, N, num_act)
    assert bool(jnp.all(jnp.isfinite(fs))) and bool(jnp.all(jnp.isfinite(fa)))
    print("KERNEL_OK")
</pallas_src>

<mosaic_0001>
module attributes {stable_mosaic.version = 11 : i64} {
  func.func @_decoder_kernel(%arg0: i32, %arg1: i32, %arg2: i32, %arg3: memref<1x1x8x16xf32, #tpu.memory_space<vmem>>, %arg4: memref<1x8x8xf32, #tpu.memory_space<vmem>>, %arg5: memref<1x8x8xi32, #tpu.memory_space<vmem>>, %arg6: memref<1x8x1xf32, #tpu.memory_space<vmem>>, %arg7: memref<64x32xbf16, #tpu.memory_space<vmem>>, %arg8: memref<1x3x64xf32, #tpu.memory_space<vmem>>, %arg9: memref<1x16x32xbf16, #tpu.memory_space<vmem>>, %arg10: memref<1x1x32xf32, #tpu.memory_space<vmem>>, %arg11: memref<1x8x128xbf16, #tpu.memory_space<vmem>>, %arg12: memref<1x32x64xbf16, #tpu.memory_space<vmem>>, %arg13: memref<1x64x32xbf16, #tpu.memory_space<vmem>>, %arg14: memref<1x1x32xf32, #tpu.memory_space<vmem>>, %arg15: memref<1x1x32x32xbf16, #tpu.memory_space<vmem>>, %arg16: memref<1x1x32x128xbf16, #tpu.memory_space<vmem>>, %arg17: memref<1x1x3x32xf32, #tpu.memory_space<vmem>>, %arg18: memref<1x32x128xbf16, #tpu.memory_space<vmem>>, %arg19: memref<1x1x128xf32, #tpu.memory_space<vmem>>, %arg20: memref<1x1x8x128xf32, #tpu.memory_space<vmem>>, %arg21: memref<8x32xf32, #tpu.memory_space<vmem>>, %arg22: memref<8x32xf32, #tpu.memory_space<vmem>>, %arg23: memref<64x32xf32, #tpu.memory_space<vmem>>) attributes {dimension_semantics = [#tpu.dimension_semantics<parallel>, #tpu.dimension_semantics<parallel>, #tpu.dimension_semantics<arbitrary>], iteration_bounds = array<i64: 2, 2, 2>, scalar_prefetch = 0 : i64, scratch_operands = 3 : i64, tpu.core_type = #tpu.core_type<tc>, window_params = [{transform_indices = @transform_0, window_bounds = array<i64: 1, 1, 8, 16>}, {transform_indices = @transform_1, window_bounds = array<i64: 1, 8, 8>}, {transform_indices = @transform_2, window_bounds = array<i64: 1, 8, 8>}, {transform_indices = @transform_3, window_bounds = array<i64: 1, 8, 1>}, {pipeline_mode = #tpu.pipeline_mode<synchronous>, transform_indices = @transform_4, window_bounds = array<i64: 64, 32>}, {transform_indices = @transform_5, window_bounds = array<i64: 1, 3, 64>}, {transform_indices = @transform_6, window_bounds = array<i64: 1, 16, 32>}, {transform_indices = @transform_7, window_bounds = array<i64: 1, 1, 32>}, {transform_indices = @transform_8, window_bounds = array<i64: 1, 8, 128>}, {transform_indices = @transform_9, window_bounds = array<i64: 1, 32, 64>}, {transform_indices = @transform_10, window_bounds = array<i64: 1, 64, 32>}, {transform_indices = @transform_11, window_bounds = array<i64: 1, 1, 32>}, {transform_indices = @transform_12, window_bounds = array<i64: 1, 1, 32, 32>}, {transform_indices = @transform_13, window_bounds = array<i64: 1, 1, 32, 128>}, {transform_indices = @transform_14, window_bounds = array<i64: 1, 1, 3, 32>}, {transform_indices = @transform_15, window_bounds = array<i64: 1, 32, 128>}, {transform_indices = @transform_16, window_bounds = array<i64: 1, 1, 128>}, {transform_indices = @transform_17, window_bounds = array<i64: 1, 1, 8, 128>}]} {
    %c0_i32 = arith.constant 0 : i32
    %0 = arith.cmpi eq, %arg2, %c0_i32 : i32
    %1 = arith.extui %0 : i1 to i32
    %c0_i32_0 = arith.constant 0 : i32
    %2 = arith.cmpi ne, %1, %c0_i32_0 : i32
    scf.if %2 {
      %c0_33 = arith.constant 0 : index
      %c0_34 = arith.constant 0 : index
      %c0_35 = arith.constant 0 : index
      %c0_36 = arith.constant 0 : index
      %70 = vector.load %arg3[%c0_33, %c0_34, %c0_35, %c0_36] : memref<1x1x8x16xf32, #tpu.memory_space<vmem>>, vector<1x1x8x16xf32>
      %71 = vector.shape_cast %70 : vector<1x1x8x16xf32> to vector<8x16xf32>
      %72 = arith.truncf %71 : vector<8x16xf32> to vector<8x16xbf16>
      %c0_37 = arith.constant 0 : index
      %c0_38 = arith.constant 0 : index
      %c0_39 = arith.constant 0 : index
      %73 = vector.load %arg9[%c0_37, %c0_38, %c0_39] : memref<1x16x32xbf16, #tpu.memory_space<vmem>>, vector<1x16x32xbf16>
      %74 = vector.shape_cast %73 : vector<1x16x32xbf16> to vector<16x32xbf16>
      %cst_40 = arith.constant dense<0.000000e+00> : vector<8x32xf32>
      %75 = tpu.matmul %72, %74, %cst_40 {dimension_numbers = #tpu.dot_dimension_numbers<[1], [0], [0], [1], [0, 0, 1, 1], [], []>} : vector<8x16xbf16>, vector<16x32xbf16>, vector<8x32xf32> -> vector<8x32xf32>
      %c0_41 = arith.constant 0 : index
      %c0_42 = arith.constant 0 : index
      %c0_43 = arith.constant 0 : index
      %76 = vector.load %arg10[%c0_41, %c0_42, %c0_43] : memref<1x1x32xf32, #tpu.memory_space<vmem>>, vector<1x1x32xf32>
      %77 = vector.shape_cast %76 : vector<1x1x32xf32> to vector<1x32xf32>
      %78 = vector.broadcast %77 : vector<1x32xf32> to vector<8x32xf32>
      %79 = arith.addf %75, %78 : vector<8x32xf32>
      %c0_44 = arith.constant 0 : index
      %c0_45 = arith.constant 0 : index
      %80 = vector.load %arg21[%c0_44, %c0_45] : memref<8x32xf32, #tpu.memory_space<vmem>>, vector<8x32xf32>
      tpu.vector_store %arg21[%c0_44, %c0_45], %79 {strides = array<i32>} : memref<8x32xf32, #tpu.memory_space<vmem>>, vector<8x32xf32>,
      %c0_46 = arith.constant 0 : index
      %c0_47 = arith.constant 0 : index
      %81 = vector.load %arg22[%c0_46, %c0_47] : memref<8x32xf32, #tpu.memory_space<vmem>>, vector<8x32xf32>
      tpu.vector_store %arg22[%c0_46, %c0_47], %79 {strides = array<i32>} : memref<8x32xf32, #tpu.memory_space<vmem>>, vector<8x32xf32>,
      %c0_48 = arith.constant 0 : index
      %c0_49 = arith.constant 0 : index
      %c0_50 = arith.constant 0 : index
      %82 = vector.load %arg4[%c0_48, %c0_49, %c0_50] : memref<1x8x8xf32, #tpu.memory_space<vmem>>, vector<1x8x8xf32>
      %83 = vector.shape_cast %82 : vector<1x8x8xf32> to vector<8x8xf32>
      %84 = arith.truncf %83 : vector<8x8xf32> to vector<8x8xbf16>
      %c0_51 = arith.constant 0 : index
      %c0_52 = arith.constant 0 : index
      %c0_53 = arith.constant 0 : index
      %85 = vector.load %arg11[%c0_51, %c0_52, %c0_53] : memref<1x8x128xbf16, #tpu.memory_space<vmem>>, vector<1x8x128xbf16>
      %86 = vector.shape_cast %85 : vector<1x8x128xbf16> to vector<8x128xbf16>
      %cst_54 = arith.constant dense<0.000000e+00> : vector<8x128xf32>
      %87 = tpu.matmul %84, %86, %cst_54 {dimension_numbers = #tpu.dot_dimension_numbers<[1], [0], [0], [1], [0, 0, 1, 1], [], []>} : vector<8x8xbf16>, vector<8x128xbf16>, vector<8x128xf32> -> vector<8x128xf32>
      %88 = vector.extract_strided_slice %87 {offsets = [0, 0], sizes = [8, 64], strides = [1, 1]} : vector<8x128xf32> to vector<8x64xf32>
      %89 = vector.extract_strided_slice %87 {offsets = [0, 64], sizes = [8, 64], strides = [1, 1]} : vector<8x128xf32> to vector<8x64xf32>
      %c0_55 = arith.constant 0 : index
      %c0_56 = arith.constant 0 : index
      %90 = vector.load %arg7[%c0_55, %c0_56] : memref<64x32xbf16, #tpu.memory_space<vmem>>, vector<64x32xbf16>
      %c0_57 = arith.constant 0 : index
      %c0_58 = arith.constant 0 : index
      %c0_59 = arith.constant 0 : index
      %91 = vector.load %arg12[%c0_57, %c0_58, %c0_59] : memref<1x32x64xbf16, #tpu.memory_space<vmem>>, vector<1x32x64xbf16>
      %92 = vector.shape_cast %91 : vector<1x32x64xbf16> to vector<32x64xbf16>
      %cst_60 = arith.constant dense<0.000000e+00> : vector<64x64xf32>
      %93 = tpu.matmul %90, %92, %cst_60 {dimension_numbers = #tpu.dot_dimension_numbers<[1], [0], [0], [1], [0, 0, 1, 1], [], []>} : vector<64x32xbf16>, vector<32x64xbf16>, vector<64x64xf32> -> vector<64x64xf32>
      %c0_61 = arith.constant 0 : index
      %c0_62 = arith.constant 0 : index
      %c0_63 = arith.constant 0 : index
      %94 = vector.load %arg8[%c0_61, %c0_62, %c0_63] : memref<1x3x64xf32, #tpu.memory_space<vmem>>, vector<1x3x64xf32>
      %95 = vector.shape_cast %94 : vector<1x3x64xf32> to vector<3x64xf32>
      %96 = vector.extract_strided_slice %95 {offsets = [0, 0], sizes = [1, 64], strides = [1, 1]} : vector<3x64xf32> to vector<1x64xf32>
      %97 = vector.extract_strided_slice %95 {offsets = [1, 0], sizes = [1, 64], strides = [1, 1]} : vector<3x64xf32> to vector<1x64xf32>
      %98 = arith.subf %97, %96 : vector<1x64xf32>
      %99 = vector.extract_strided_slice %95 {offsets = [2, 0], sizes = [1, 64], strides = [1, 1]} : vector<3x64xf32> to vector<1x64xf32>
      %100 = arith.subf %99, %96 : vector<1x64xf32>
      %c0_64 = arith.constant 0 : index
      %c0_65 = arith.constant 0 : index
      %c0_66 = arith.constant 0 : index
      %101 = vector.load %arg5[%c0_64, %c0_65, %c0_66] : memref<1x8x8xi32, #tpu.memory_space<vmem>>, vector<1x8x8xi32>
      %102 = vector.shape_cast %101 : vector<1x8x8xi32> to vector<8x8xi32>
      %c1_i32_67 = arith.constant 1 : i32
      %103 = vector.broadcast %c1_i32_67 : i32 to vector<8x8xi32>
      %104 = arith.cmpi eq, %102, %103 : vector<8x8xi32>
      %105 = arith.extui %104 : vector<8x8xi1> to vector<8x8xi32>
      %106 = arith.sitofp %105 : vector<8x8xi32> to vector<8x8xf32>
      %107 = vector.shape_cast %106 : vector<8x8xf32> to vector<8x8x1xf32>
      %c2_i32 = arith.constant 2 : i32
      %108 = vector.broadcast %c2_i32 : i32 to vector<8x8xi32>
      %109 = arith.cmpi eq, %102, %108 : vector<8x8xi32>
      %110 = arith.extui %109 : vector<8x8xi1> to vector<8x8xi32>
      %111 = arith.sitofp %110 : vector<8x8xi32> to vector<8x8xf32>
      %112 = vector.shape_cast %111 : vector<8x8xf32> to vector<8x8x1xf32>
      %113 = vector.shape_cast %93 : vector<64x64xf32> to vector<8x8x64xf32>
      %114 = vector.shape_cast %96 : vector<1x64xf32> to vector<1x1x64xf32>
      %115 = vector.broadcast %114 : vector<1x1x64xf32> to vector<8x8x64xf32>
      %116 = arith.addf %113, %115 : vector<8x8x64xf32>
      %117 = vector.shape_cast %98 : vector<1x64xf32> to vector<1x1x64xf32>
      %118 = vector.broadcast %107 : vector<8x8x1xf32> to vector<8x8x64xf32>
      %119 = vector.broadcast %117 : vector<1x1x64xf32> to vector<8x8x64xf32>
      %120 = arith.mulf %118, %119 : vector<8x8x64xf32>
      %121 = arith.addf %116, %120 : vector<8x8x64xf32>
      %122 = vector.shape_cast %100 : vector<1x64xf32> to vector<1x1x64xf32>
      %123 = vector.broadcast %112 : vector<8x8x1xf32> to vector<8x8x64xf32>
      %124 = vector.broadcast %122 : vector<1x1x64xf32> to vector<8x8x64xf32>
      %125 = arith.mulf %123, %124 : vector<8x8x64xf32>
      %126 = arith.addf %121, %125 : vector<8x8x64xf32>
      %127 = vector.shape_cast %88 : vector<8x64xf32> to vector<8x1x64xf32>
      %128 = vector.broadcast %127 : vector<8x1x64xf32> to vector<8x8x64xf32>
      %129 = arith.addf %126, %128 : vector<8x8x64xf32>
      %130 = vector.shape_cast %89 : vector<8x64xf32> to vector<1x8x64xf32>
      %131 = vector.broadcast %130 : vector<1x8x64xf32> to vector<8x8x64xf32>
      %132 = arith.addf %129, %131 : vector<8x8x64xf32>
      %cst_68 = arith.constant 0.000000e+00 : f32
      %133 = vector.broadcast %cst_68 : f32 to vector<8x8x64xf32>
      %134 = arith.maximumf %132, %133 : vector<8x8x64xf32>
      %135 = vector.shape_cast %134 : vector<8x8x64xf32> to vector<64x64xf32>
      %136 = arith.truncf %135 : vector<64x64xf32> to vector<64x64xbf16>
      %c0_69 = arith.constant 0 : index
      %c0_70 = arith.constant 0 : index
      %c0_71 = arith.constant 0 : index
      %137 = vector.load %arg13[%c0_69, %c0_70, %c0_71] : memref<1x64x32xbf16, #tpu.memory_space<vmem>>, vector<1x64x32xbf16>
      %138 = vector.shape_cast %137 : vector<1x64x32xbf16> to vector<64x32xbf16>
      %cst_72 = arith.constant dense<0.000000e+00> : vector<64x32xf32>
      %139 = tpu.matmul %136, %138, %cst_72 {dimension_numbers = #tpu.dot_dimension_numbers<[1], [0], [0], [1], [0, 0, 1, 1], [], []>} : vector<64x64xbf16>, vector<64x32xbf16>, vector<64x32xf32> -> vector<64x32xf32>
      %c0_73 = arith.constant 0 : index
      %c0_74 = arith.constant 0 : index
      %c0_75 = arith.constant 0 : index
      %140 = vector.load %arg14[%c0_73, %c0_74, %c0_75] : memref<1x1x32xf32, #tpu.memory_space<vmem>>, vector<1x1x32xf32>
      %141 = vector.shape_cast %140 : vector<1x1x32xf32> to vector<1x32xf32>
      %142 = vector.broadcast %141 : vector<1x32xf32> to vector<64x32xf32>
      %143 = arith.addf %139, %142 : vector<64x32xf32>
      %c0_76 = arith.constant 0 : index
      %c0_77 = arith.constant 0 : index
      %144 = vector.load %arg23[%c0_76, %c0_77] : memref<64x32xf32, #tpu.memory_space<vmem>>, vector<64x32xf32>
      tpu.vector_store %arg23[%c0_76, %c0_77], %143 {strides = array<i32>} : memref<64x32xf32, #tpu.memory_space<vmem>>, vector<64x32xf32>,
    } else {
    }
    %c0 = arith.constant 0 : index
    %c0_1 = arith.constant 0 : index
    %c0_2 = arith.constant 0 : index
    %c0_3 = arith.constant 0 : index
    %3 = vector.load %arg17[%c0, %c0_1, %c0_2, %c0_3] : memref<1x1x3x32xf32, #tpu.memory_space<vmem>>, vector<1x1x3x32xf32>
    %4 = vector.shape_cast %3 : vector<1x1x3x32xf32> to vector<3x32xf32>
    %5 = vector.extract_strided_slice %4 {offsets = [0, 0], sizes = [1, 32], strides = [1, 1]} : vector<3x32xf32> to vector<1x32xf32>
    %6 = vector.extract_strided_slice %4 {offsets = [1, 0], sizes = [1, 32], strides = [1, 1]} : vector<3x32xf32> to vector<1x32xf32>
    %7 = vector.extract_strided_slice %4 {offsets = [2, 0], sizes = [1, 32], strides = [1, 1]} : vector<3x32xf32> to vector<1x32xf32>
    %c0_4 = arith.constant 0 : index
    %c0_5 = arith.constant 0 : index
    %8 = vector.load %arg22[%c0_4, %c0_5] : memref<8x32xf32, #tpu.memory_space<vmem>>, vector<8x32xf32>
    %9 = arith.truncf %8 : vector<8x32xf32> to vector<8x32xbf16>
    %c0_6 = arith.constant 0 : index
    %c0_7 = arith.constant 0 : index
    %c0_8 = arith.constant 0 : index
    %c0_9 = arith.constant 0 : index
    %10 = vector.load %arg16[%c0_6, %c0_7, %c0_8, %c0_9] : memref<1x1x32x128xbf16, #tpu.memory_space<vmem>>, vector<1x1x32x128xbf16>
    %11 = vector.shape_cast %10 : vector<1x1x32x128xbf16> to vector<32x128xbf16>
    %cst = arith.constant dense<0.000000e+00> : vector<8x128xf32>
    %12 = tpu.matmul %9, %11, %cst {dimension_numbers = #tpu.dot_dimension_numbers<[1], [0], [0], [1], [0, 0, 1, 1], [], []>} : vector<8x32xbf16>, vector<32x128xbf16>, vector<8x128xf32> -> vector<8x128xf32>
    %13 = vector.extract_strided_slice %12 {offsets = [0, 0], sizes = [8, 32], strides = [1, 1]} : vector<8x128xf32> to vector<8x32xf32>
    %14 = vector.extract_strided_slice %12 {offsets = [0, 32], sizes = [8, 32], strides = [1, 1]} : vector<8x128xf32> to vector<8x32xf32>
    %15 = vector.extract_strided_slice %12 {offsets = [0, 64], sizes = [8, 32], strides = [1, 1]} : vector<8x128xf32> to vector<8x32xf32>
    %16 = vector.extract_strided_slice %12 {offsets = [0, 96], sizes = [8, 32], strides = [1, 1]} : vector<8x128xf32> to vector<8x32xf32>
    %17 = vector.broadcast %7 : vector<1x32xf32> to vector<8x32xf32>
    %18 = arith.addf %16, %17 : vector<8x32xf32>
    %c0_10 = arith.constant 0 : index
    %c0_11 = arith.constant 0 : index
    %19 = vector.load %arg23[%c0_10, %c0_11] : memref<64x32xf32, #tpu.memory_space<vmem>>, vector<64x32xf32>
    %20 = arith.truncf %19 : vector<64x32xf32> to vector<64x32xbf16>
    %c0_12 = arith.constant 0 : index
    %c0_13 = arith.constant 0 : index
    %c0_14 = arith.constant 0 : index
    %c0_15 = arith.constant 0 : index
    %21 = vector.load %arg15[%c0_12, %c0_13, %c0_14, %c0_15] : memref<1x1x32x32xbf16, #tpu.memory_space<vmem>>, vector<1x1x32x32xbf16>
    %22 = vector.shape_cast %21 : vector<1x1x32x32xbf16> to vector<32x32xbf16>
    %cst_16 = arith.constant dense<0.000000e+00> : vector<64x32xf32>
    %23 = tpu.matmul %20, %22, %cst_16 {dimension_numbers = #tpu.dot_dimension_numbers<[1], [0], [0], [1], [0, 0, 1, 1], [], []>} : vector<64x32xbf16>, vector<32x32xbf16>, vector<64x32xf32> -> vector<64x32xf32>
    %24 = vector.shape_cast %13 : vector<8x32xf32> to vector<8x1x32xf32>
    %25 = vector.shape_cast %14 : vector<8x32xf32> to vector<1x8x32xf32>
    %26 = vector.broadcast %24 : vector<8x1x32xf32> to vector<8x8x32xf32>
    %27 = vector.broadcast %25 : vector<1x8x32xf32> to vector<8x8x32xf32>
    %28 = arith.addf %26, %27 : vector<8x8x32xf32>
    %29 = vector.shape_cast %5 : vector<1x32xf32> to vector<1x1x32xf32>
    %30 = vector.broadcast %29 : vector<1x1x32xf32> to vector<8x8x32xf32>
    %31 = arith.addf %28, %30 : vector<8x8x32xf32>
    %32 = vector.shape_cast %31 : vector<8x8x32xf32> to vector<64x32xf32>
    %33 = arith.addf %23, %32 : vector<64x32xf32>
    %cst_17 = arith.constant 0.000000e+00 : f32
    %34 = vector.broadcast %cst_17 : f32 to vector<64x32xf32>
    %35 = arith.maximumf %33, %34 : vector<64x32xf32>
    %36 = arith.addf %19, %35 : vector<64x32xf32>
    %c0_18 = arith.constant 0 : index
    %c0_19 = arith.constant 0 : index
    %37 = vector.load %arg23[%c0_18, %c0_19] : memref<64x32xf32, #tpu.memory_space<vmem>>, vector<64x32xf32>
    tpu.vector_store %arg23[%c0_18, %c0_19], %36 {strides = array<i32>} : memref<64x32xf32, #tpu.memory_space<vmem>>, vector<64x32xf32>,
    %cst_20 = arith.constant 5.000000e-01 : f32
    %38 = vector.broadcast %cst_20 : f32 to vector<64x32xf32>
    %39 = arith.mulf %38, %33 : vector<64x32xf32>
    %40 = math.tanh %39 : vector<64x32xf32>
    %cst_21 = arith.constant 5.000000e-01 : f32
    %41 = vector.broadcast %cst_21 : f32 to vector<64x32xf32>
    %42 = arith.mulf %41, %40 : vector<64x32xf32>
    %cst_22 = arith.constant 5.000000e-01 : f32
    %43 = vector.broadcast %cst_22 : f32 to vector<64x32xf32>
    %44 = arith.addf %42, %43 : vector<64x32xf32>
    %c0_23 = arith.constant 0 : index
    %c0_24 = arith.constant 0 : index
    %c0_25 = arith.constant 0 : index
    %45 = vector.load %arg6[%c0_23, %c0_24, %c0_25] : memref<1x8x1xf32, #tpu.memory_space<vmem>>, vector<1x8x1xf32>
    %46 = vector.shape_cast %45 : vector<1x8x1xf32> to vector<8x1xf32>
    %47 = vector.shape_cast %46 : vector<8x1xf32> to vector<1x8x1xf32>
    %48 = vector.shape_cast %44 : vector<64x32xf32> to vector<8x8x32xf32>
    %49 = vector.broadcast %47 : vector<1x8x1xf32> to vector<8x8x32xf32>
    %50 = arith.mulf %48, %49 : vector<8x8x32xf32>
    %51 = vector.shape_cast %18 : vector<8x32xf32> to vector<1x8x32xf32>
    %52 = vector.broadcast %51 : vector<1x8x32xf32> to vector<8x8x32xf32>
    %53 = arith.mulf %50, %52 : vector<8x8x32xf32>
    %cst_26 = arith.constant dense<0.000000e+00> : vector<8x32xf32>
    %54 = vector.multi_reduction <add>, %53, %cst_26 [1] : vector<8x8x32xf32> to vector<8x32xf32>
    %cst_27 = arith.constant dense<0.000000e+00> : vector<8x32xf32>
    %55 = vector.multi_reduction <add>, %50, %cst_27 [1] : vector<8x8x32xf32> to vector<8x32xf32>
    %cst_28 = arith.constant 9.99999968E-21 : f32
    %56 = vector.broadcast %cst_28 : f32 to vector<8x32xf32>
    %57 = arith.addf %55, %56 : vector<8x32xf32>
    %58 = vector.broadcast %6 : vector<1x32xf32> to vector<8x32xf32>
    %59 = arith.addf %15, %58 : vector<8x32xf32>
    %60 = tpu.reciprocal %57 {approx = true} : vector<8x32xf32> -> vector<8x32xf32>
    %61 = arith.mulf %54, %60 : vector<8x32xf32>
    %62 = arith.addf %59, %61 : vector<8x32xf32>
    %cst_29 = arith.constant 0.000000e+00 : f32
    %63 = vector.broadcast %cst_29 : f32 to vector<8x32xf32>
    %64 = arith.maximumf %62, %63 : vector<8x32xf32>
    %65 = arith.addf %8, %64 : vector<8x32xf32>
    %c0_30 = arith.constant 0 : index
    %c0_31 = arith.constant 0 : index
    %66 = vector.load %arg22[%c0_30, %c0_31] : memref<8x32xf32, #tpu.memory_space<vmem>>, vector<8x32xf32>
    tpu.vector_store %arg22[%c0_30, %c0_31], %65 {strides = array<i32>} : memref<8x32xf32, #tpu.memory_space<vmem>>, vector<8x32xf32>,
    %c1_i32 = arith.constant 1 : i32
    %67 = arith.cmpi eq, %arg2, %c1_i32 : i32
    %68 = arith.extui %67 : i1 to i32
    %c0_i32_32 = arith.constant 0 : i32
    %69 = arith.cmpi ne, %68, %c0_i32_32 : i32
    scf.if %69 {
      %c0_33 = arith.constant 0 : index
      %c0_34 = arith.constant 0 : index
      %70 = vector.load %arg21[%c0_33, %c0_34] : memref<8x32xf32, #tpu.memory_space<vmem>>, vector<8x32xf32>
      %c0_35 = arith.constant 0 : index
      %c0_36 = arith.constant 0 : index
      %71 = vector.load %arg22[%c0_35, %c0_36] : memref<8x32xf32, #tpu.memory_space<vmem>>, vector<8x32xf32>
      %72 = arith.addf %70, %71 : vector<8x32xf32>
      %73 = arith.truncf %72 : vector<8x32xf32> to vector<8x32xbf16>
      %c0_37 = arith.constant 0 : index
      %c0_38 = arith.constant 0 : index
      %c0_39 = arith.constant 0 : index
      %74 = vector.load %arg18[%c0_37, %c0_38, %c0_39] : memref<1x32x128xbf16, #tpu.memory_space<vmem>>, vector<1x32x128xbf16>
      %75 = vector.shape_cast %74 : vector<1x32x128xbf16> to vector<32x128xbf16>
      %cst_40 = arith.constant dense<0.000000e+00> : vector<8x128xf32>
      %76 = tpu.matmul %73, %75, %cst_40 {dimension_numbers = #tpu.dot_dimension_numbers<[1], [0], [0], [1], [0, 0, 1, 1], [], []>} : vector<8x32xbf16>, vector<32x128xbf16>, vector<8x128xf32> -> vector<8x128xf32>
      %c0_41 = arith.constant 0 : index
      %c0_42 = arith.constant 0 : index
      %c0_43 = arith.constant 0 : index
      %77 = vector.load %arg19[%c0_41, %c0_42, %c0_43] : memref<1x1x128xf32, #tpu.memory_space<vmem>>, vector<1x1x128xf32>
      %78 = vector.shape_cast %77 : vector<1x1x128xf32> to vector<1x128xf32>
      %79 = vector.broadcast %78 : vector<1x128xf32> to vector<8x128xf32>
      %80 = arith.addf %76, %79 : vector<8x128xf32>
      %c0_44 = arith.constant 0 : index
      %c0_45 = arith.constant 0 : index
      %c0_46 = arith.constant 0 : index
      %c0_47 = arith.constant 0 : index
      %81 = vector.load %arg20[%c0_44, %c0_45, %c0_46, %c0_47] : memref<1x1x8x128xf32, #tpu.memory_space<vmem>>, vector<1x1x8x128xf32>
      %82 = vector.shape_cast %81 : vector<1x1x8x128xf32> to vector<8x128xf32>
      %83 = vector.shape_cast %80 : vector<8x128xf32> to vector<1x1x8x128xf32>
      tpu.vector_store %arg20[%c0_44, %c0_45, %c0_46, %c0_47], %83 {strides = array<i32>} : memref<1x1x8x128xf32, #tpu.memory_space<vmem>>, vector<1x1x8x128xf32>,
    } else {
    }
    return
  }
  func.func @transform_0(%arg0: i32, %arg1: i32, %arg2: i32) -> (i32, i32, i32, i32) {
    %c0_i32 = arith.constant 0 : i32
    %c0_i32_0 = arith.constant 0 : i32
    %c0_i32_1 = arith.constant 0 : i32
    return %arg0, %arg1, %c0_i32, %c0_i32_0 : i32, i32, i32, i32
  }
  func.func @transform_1(%arg0: i32, %arg1: i32, %arg2: i32) -> (i32, i32, i32) {
    %c0_i32 = arith.constant 0 : i32
    %c0_i32_0 = arith.constant 0 : i32
    %c0_i32_1 = arith.constant 0 : i32
    return %arg1, %c0_i32, %c0_i32_0 : i32, i32, i32
  }
  func.func @transform_2(%arg0: i32, %arg1: i32, %arg2: i32) -> (i32, i32, i32) {
    %c0_i32 = arith.constant 0 : i32
    %c0_i32_0 = arith.constant 0 : i32
    %c0_i32_1 = arith.constant 0 : i32
    return %arg1, %c0_i32, %c0_i32_0 : i32, i32, i32
  }
  func.func @transform_3(%arg0: i32, %arg1: i32, %arg2: i32) -> (i32, i32, i32) {
    %c0_i32 = arith.constant 0 : i32
    %c0_i32_0 = arith.constant 0 : i32
    %c0_i32_1 = arith.constant 0 : i32
    return %arg1, %c0_i32, %c0_i32_0 : i32, i32, i32
  }
  func.func @transform_4(%arg0: i32, %arg1: i32, %arg2: i32) -> (i32, i32) {
    %c0_i32 = arith.constant 0 : i32
    %c0_i32_0 = arith.constant 0 : i32
    %c0_i32_1 = arith.constant 0 : i32
    return %c0_i32, %c0_i32_0 : i32, i32
  }
  func.func @transform_5(%arg0: i32, %arg1: i32, %arg2: i32) -> (i32, i32, i32) {
    %c0_i32 = arith.constant 0 : i32
    %c0_i32_0 = arith.constant 0 : i32
    %c0_i32_1 = arith.constant 0 : i32
    return %arg0, %c0_i32, %c0_i32_0 : i32, i32, i32
  }
  func.func @transform_6(%arg0: i32, %arg1: i32, %arg2: i32) -> (i32, i32, i32) {
    %c0_i32 = arith.constant 0 : i32
    %c0_i32_0 = arith.constant 0 : i32
    %c0_i32_1 = arith.constant 0 : i32
    return %arg0, %c0_i32, %c0_i32_0 : i32, i32, i32
  }
  func.func @transform_7(%arg0: i32, %arg1: i32, %arg2: i32) -> (i32, i32, i32) {
    %c0_i32 = arith.constant 0 : i32
    %c0_i32_0 = arith.constant 0 : i32
    %c0_i32_1 = arith.constant 0 : i32
    return %arg0, %c0_i32, %c0_i32_0 : i32, i32, i32
  }
  func.func @transform_8(%arg0: i32, %arg1: i32, %arg2: i32) -> (i32, i32, i32) {
    %c0_i32 = arith.constant 0 : i32
    %c0_i32_0 = arith.constant 0 : i32
    %c0_i32_1 = arith.constant 0 : i32
    return %arg0, %c0_i32, %c0_i32_0 : i32, i32, i32
  }
  func.func @transform_9(%arg0: i32, %arg1: i32, %arg2: i32) -> (i32, i32, i32) {
    %c0_i32 = arith.constant 0 : i32
    %c0_i32_0 = arith.constant 0 : i32
    %c0_i32_1 = arith.constant 0 : i32
    return %arg0, %c0_i32, %c0_i32_0 : i32, i32, i32
  }
  func.func @transform_10(%arg0: i32, %arg1: i32, %arg2: i32) -> (i32, i32, i32) {
    %c0_i32 = arith.constant 0 : i32
    %c0_i32_0 = arith.constant 0 : i32
    %c0_i32_1 = arith.constant 0 : i32
    return %arg0, %c0_i32, %c0_i32_0 : i32, i32, i32
  }
  func.func @transform_11(%arg0: i32, %arg1: i32, %arg2: i32) -> (i32, i32, i32) {
    %c0_i32 = arith.constant 0 : i32
    %c0_i32_0 = arith.constant 0 : i32
    %c0_i32_1 = arith.constant 0 : i32
    return %arg0, %c0_i32, %c0_i32_0 : i32, i32, i32
  }
  func.func @transform_12(%arg0: i32, %arg1: i32, %arg2: i32) -> (i32, i32, i32, i32) {
    %c0_i32 = arith.constant 0 : i32
    %c0_i32_0 = arith.constant 0 : i32
    %c0_i32_1 = arith.constant 0 : i32
    return %arg0, %arg2, %c0_i32, %c0_i32_0 : i32, i32, i32, i32
  }
  func.func @transform_13(%arg0: i32, %arg1: i32, %arg2: i32) -> (i32, i32, i32, i32) {
    %c0_i32 = arith.constant 0 : i32
    %c0_i32_0 = arith.constant 0 : i32
    %c0_i32_1 = arith.constant 0 : i32
    return %arg0, %arg2, %c0_i32, %c0_i32_0 : i32, i32, i32, i32
  }
  func.func @transform_14(%arg0: i32, %arg1: i32, %arg2: i32) -> (i32, i32, i32, i32) {
    %c0_i32 = arith.constant 0 : i32
    %c0_i32_0 = arith.constant 0 : i32
    %c0_i32_1 = arith.constant 0 : i32
    return %arg0, %arg2, %c0_i32, %c0_i32_0 : i32, i32, i32, i32
  }
  func.func @transform_15(%arg0: i32, %arg1: i32, %arg2: i32) -> (i32, i32, i32) {
    %c0_i32 = arith.constant 0 : i32
    %c0_i32_0 = arith.constant 0 : i32
    %c0_i32_1 = arith.constant 0 : i32
    return %arg0, %c0_i32, %c0_i32_0 : i32, i32, i32
  }
  func.func @transform_16(%arg0: i32, %arg1: i32, %arg2: i32) -> (i32, i32, i32) {
    %c0_i32 = arith.constant 0 : i32
    %c0_i32_0 = arith.constant 0 : i32
    %c0_i32_1 = arith.constant 0 : i32
    return %arg0, %c0_i32, %c0_i32_0 : i32, i32, i32
  }
  func.func @transform_17(%arg0: i32, %arg1: i32, %arg2: i32) -> (i32, i32, i32, i32) {
    %c0_i32 = arith.constant 0 : i32
    %c0_i32_0 = arith.constant 0 : i32
    %c0_i32_1 = arith.constant 0 : i32
    return %arg0, %arg1, %c0_i32, %c0_i32_0 : i32, i32, i32, i32
  }
}

</mosaic_0001>

<llo_original>
// kernel: tpu_custom_call.1
$region0: #{tpu_custom_call.1}
  #allocation0 [shape = 'u32[]', space=smem, size = 0x4, offset = 0x4, fixed_abs, tag = 'smem constant byte address 0x4 - core index']
  #allocation1 [shape = 'u32[144,128]{1,0:T(1,128)}', space=vmem, size = 0x12000, scoped, tag = 'internal scratch']
  #allocation2 [shape = 'f32[8,32]{1,0:T(8,128)}', space=vmem, size = 0x1000, scoped, tag = 'scratch operand']
  #allocation3 [shape = 'f32[8,32]{1,0:T(8,128)}', space=vmem, size = 0x1000, scoped, tag = 'scratch operand']
  #allocation4 [shape = 'f32[64,32]{1,0:T(8,128)}', space=vmem, size = 0x8000, scoped, tag = 'scratch operand']
  %s0 = inlined_call_operand.vmem [shape: f32[2,2,8,16], index: 0, kind: input, shape index: {}]
  %s1 = inlined_call_operand.hbm [shape: f32[2,8,8], index: 1, kind: input, shape index: {}]
  %s2 = inlined_call_operand.hbm [shape: s32[2,8,8], index: 2, kind: input, shape index: {}]
  %s3 = inlined_call_operand.vmem [shape: f32[2,8,1], index: 3, kind: input, shape index: {}]
  %s4 = inlined_call_operand.vmem [shape: bf16[64,32], index: 4, kind: input, shape index: {}]
  %s5 = inlined_call_operand.vmem [shape: f32[2,3,64], index: 5, kind: input, shape index: {}]
  %s6 = inlined_call_operand.hbm [shape: bf16[2,16,32], index: 6, kind: input, shape index: {}]
  %s7 = inlined_call_operand.hbm [shape: f32[2,1,32], index: 7, kind: input, shape index: {}]
  %s8 = inlined_call_operand.hbm [shape: bf16[2,8,128], index: 8, kind: input, shape index: {}]
  %s9 = inlined_call_operand.vmem [shape: bf16[2,32,64], index: 9, kind: input, shape index: {}]
  %s10 = inlined_call_operand.vmem [shape: bf16[2,64,32], index: 10, kind: input, shape index: {}]
  %s11 = inlined_call_operand.hbm [shape: f32[2,1,32], index: 11, kind: input, shape index: {}]
  %s12 = inlined_call_operand.vmem [shape: bf16[2,2,32,32], index: 12, kind: input, shape index: {}]
  %s13 = inlined_call_operand.vmem [shape: bf16[2,2,32,128], index: 13, kind: input, shape index: {}]
  %s14 = inlined_call_operand.vmem [shape: f32[2,2,3,32], index: 14, kind: input, shape index: {}]
  %s15 = inlined_call_operand.vmem [shape: bf16[2,32,128], index: 15, kind: input, shape index: {}]
  %s16 = inlined_call_operand.vmem [shape: f32[2,1,128], index: 16, kind: input, shape index: {}]
  %s17 = inlined_call_operand.hbm [shape: f32[2,2,8,128], index: 17, kind: output, shape index: {}]
  %s18 = sld [smem:[#allocation0]]
  $region133: #{tpu_custom_call.1} parent=0
    _
  %s20 = ssub.s32 1, %s18
  %s21 = scalar_select 0, %s20, %s18
  $region1: #{tpu_custom_call.1} parent=0
    #allocation5 [shape = 'u8[8192]{0}', space=vmem, size = 0x2000, scoped, tag = 'input window, operand 1']
    #allocation6 [shape = 's32[2]{0}', space=sflag, size = 0x8, scoped, tag = 'scoped memory for tpu_custom_call.1']
    #allocation7 [shape = 's32[2]{0}', space=sflag, size = 0x8, scoped, tag = 'scoped memory for tpu_custom_call.1']
    #allocation8 [shape = 'u8[8192]{0}', space=vmem, size = 0x2000, scoped, tag = 'input window, operand 2']
    #allocation9 [shape = 's32[2]{0}', space=sflag, size = 0x8, scoped, tag = 'scoped memory for tpu_custom_call.1']
    #allocation10 [shape = 'u8[8192]{0}', space=vmem, size = 0x2000, scoped, tag = 'input window, operand 6']
    #allocation11 [shape = 'u8[1024]{0}', space=vmem, size = 0x400, scoped, tag = 'input window, operand 7']
    #allocation12 [shape = 's32[2]{0}', space=sflag, size = 0x8, scoped, tag = 'scoped memory for tpu_custom_call.1']
    #allocation13 [shape = 'u8[4096]{0}', space=vmem, size = 0x1000, scoped, tag = 'input window, operand 8']
    #allocation14 [shape = 'u8[1024]{0}', space=vmem, size = 0x400, scoped, tag = 'input window, operand 11']
    #allocation15 [shape = 's32[2]{0}', space=sflag, size = 0x8, scoped, tag = 'scoped memory for tpu_custom_call.1']
    #allocation16 [shape = 'u8[8192]{0}', space=vmem, size = 0x2000, scoped, tag = 'output window, operand 0']
    %22 = vsyncpa [#allocation6], 0
    %s23 = scalar_lea.sflag [#allocation6], 1
    %24 = vsyncpa %s23, 0
    %25 = vsyncpa [#allocation9], 0
    %s26 = scalar_lea.sflag [#allocation9], 1
    %27 = vsyncpa %s26, 0
    %28 = vsyncpa [#allocation12], 0
    %s29 = scalar_lea.sflag [#allocation12], 1
    %30 = vsyncpa %s29, 0
    %31 = vsyncpa [#allocation15], 0
    %s32 = scalar_lea.sflag [#allocation15], 1
    %33 = vsyncpa %s32, 0
    %34 = vsyncpa [#allocation7], 0
    %s35 = scalar_lea.sflag [#allocation7], 1
    %36 = vsyncpa %s35, 0
    loop: start=0, step=1, limit=10
    $region2: #{tpu_custom_call.1} parent=1 // loop_pre_header
      _
    $region3: #{tpu_custom_call.1} parent=1 // loop_header
      %s38 = sphi 0, %s42
      %p39 = scmp.ge.s32.totalorder %s38, 10
      %s45 = sphi 0, %s64
      %s46 = sphi 0, %s60
      %s47 = sphi 0, %s56
      %s48 = sphi 0, %s45
      %s49 = sphi 0, %s46
      %s50 = sphi 0, %s47
      %s51 = sphi 0, %s48
      %s52 = sphi 0, %s49
      %s53 = sphi 0, %s50
      %s69 = sphi 0, %s71
      %s72 = sphi 0, %s69
      %s73 = sphi 0, %s72
      %s89 = sphi 0, %s73
      %s95 = sphi 0, %s97
      %s98 = sphi 0, %s95
      %s99 = sphi 0, %s98
      %s115 = sphi 0, %s99
      %s121 = sphi 0, %s123
      %s124 = sphi 0, %s121
      %s125 = sphi 0, %s124
      %s141 = sphi 0, %s125
      %s147 = sphi 0, %s149
      %s150 = sphi 0, %s147
      %s151 = sphi 0, %s150
      %s167 = sphi 0, %s151
      %s171 = sphi 0, %s171
      %s173 = sphi 0, %s171
      %s174 = sphi 0, %s173
      %s188 = sphi 0, %s174
      %s194 = sphi 0, %s196
      %s197 = sphi 0, %s194
      %s198 = sphi 0, %s197
      %s214 = sphi 0, %s198
      %s220 = sphi 0, %s222
      %s223 = sphi 0, %s220
      %s224 = sphi 0, %s223
      %s240 = sphi 0, %s224
      %s246 = sphi 0, %s248
      %s249 = sphi 0, %s246
      %s250 = sphi 0, %s249
      %s266 = sphi 0, %s250
      %s272 = sphi 0, %s274
      %s275 = sphi 0, %s272
      %s276 = sphi 0, %s275
      %s292 = sphi 0, %s276
      %s298 = sphi 0, %s300
      %s301 = sphi 0, %s298
      %s302 = sphi 0, %s301
      %s318 = sphi 0, %s302
      %s324 = sphi 0, %s326
      %s327 = sphi 0, %s324
      %s328 = sphi 0, %s327
      %s344 = sphi 0, %s328
      %s350 = sphi 0, %s352
      %s353 = sphi 0, %s350
      %s354 = sphi 0, %s353
      %s370 = sphi 0, %s354
      %s378 = sphi 0, %s380
      %s381 = sphi 0, %s378
      %s382 = sphi 0, %s381
      %s398 = sphi 0, %s382
      %s406 = sphi 0, %s408
      %s409 = sphi 0, %s406
      %s410 = sphi 0, %s409
      %s426 = sphi 0, %s410
      %s434 = sphi 0, %s436
      %s437 = sphi 0, %s434
      %s438 = sphi 0, %s437
      %s454 = sphi 0, %s438
      %s460 = sphi 0, %s462
      %s463 = sphi 0, %s460
      %s464 = sphi 0, %s463
      %s480 = sphi 0, %s464
      %s486 = sphi 0, %s488
      %s489 = sphi 0, %s486
      %s490 = sphi 0, %s489
      %s506 = sphi 0, %s490
      %s514 = sphi 0, %s516
      %s517 = sphi 0, %s514
      %s518 = sphi 0, %s517
      %s534 = sphi 0, %s518
    $region4: #{tpu_custom_call.1} parent=1 // loop_header_branch
      %41 = sbr.rel (%p39) target = $region8
    $region5: #{tpu_custom_call.1} parent=1 // loop_body
      %s43 = ssub.s32 %s38, 1
      %s44 = ssub.s32 %s38, 2
      %s54 = sadd.s32 1, %s47
      %p55 = scmp.ge.s32.totalorder %s54, 2
      %s56 = scalar_select %p55, 0, %s54
      %s57 = sadd.s32 1, %s46
      %s58 = scalar_select %p55, %s57, %s46
      %p59 = scmp.ge.s32.totalorder %s58, 2
      %s60 = scalar_select %p59, 0, %s58
      %s61 = sadd.s32 1, %s45
      %s62 = scalar_select %p59, %s61, %s45
      %p63 = scmp.ge.s32.totalorder %s62, 2
      %s64 = scalar_select %p63, 0, %s62
      %s65 = ssub.s32 %s45, %s64
      %s66 = ssub.s32 %s46, %s60
      %s67 = sor.u32 %s65, %s66
      %p68 = scmp.eq.s32.totalorder %s67, 0
      %s70 = sadd.s32 %s69, 1
      %s71 = scalar_select %p68, %s69, %s70
      %p74 = pneg %p68
      %p75 = scmp.eq.s32.totalorder %s38, 7
      %p76 = por %p74, %p75
      %p77 = scmp.ne.s32.totalorder %s69, %s72
      %p78 = scmp.eq.s32.totalorder %s38, 0
      %p79 = por %p77, %p78
      %p80 = scmp.ne.s32.totalorder %s69, %s72
      %p81 = scmp.eq.s32.totalorder %s43, 7
      %p82 = por %p80, %p81
      %p83 = scmp.ne.s32.totalorder %s72, %s73
      %p84 = scmp.eq.s32.totalorder %s43, 0
      %p85 = por %p83, %p84
      %p86 = scmp.ne.s32.totalorder %s72, %s73
      %p87 = scmp.eq.s32.totalorder %s44, 7
      %p88 = por %p86, %p87
      %p90 = scmp.ne.s32.totalorder %s73, %s89
      %p91 = scmp.eq.s32.totalorder %s44, 0
      %p92 = por %p90, %p91
      %s93 = ssub.s32 %s46, %s60
      %p94 = scmp.eq.s32.totalorder %s93, 0
      %s96 = sadd.s32 %s95, 1
      %s97 = scalar_select %p94, %s95, %s96
      %p100 = pneg %p94
      %p101 = scmp.eq.s32.totalorder %s38, 7
      %p102 = por %p100, %p101
      %p103 = scmp.ne.s32.totalorder %s95, %s98
      %p104 = scmp.eq.s32.totalorder %s38, 0
      %p105 = por %p103, %p104
      %p106 = scmp.ne.s32.totalorder %s95, %s98
      %p107 = scmp.eq.s32.totalorder %s43, 7
      %p108 = por %p106, %p107
      %p109 = scmp.ne.s32.totalorder %s98, %s99
      %p110 = scmp.eq.s32.totalorder %s43, 0
      %p111 = por %p109, %p110
      %p112 = scmp.ne.s32.totalorder %s98, %s99
      %p113 = scmp.eq.s32.totalorder %s44, 7
      %p114 = por %p112, %p113
      %p116 = scmp.ne.s32.totalorder %s99, %s115
      %p117 = scmp.eq.s32.totalorder %s44, 0
      %p118 = por %p116, %p117
      %s119 = ssub.s32 %s46, %s60
      %p120 = scmp.eq.s32.totalorder %s119, 0
      %s122 = sadd.s32 %s121, 1
      %s123 = scalar_select %p120, %s121, %s122
      %p126 = pneg %p120
      %p127 = scmp.eq.s32.totalorder %s38, 7
      %p128 = por %p126, %p127
      %p129 = scmp.ne.s32.totalorder %s121, %s124
      %p130 = scmp.eq.s32.totalorder %s38, 0
      %p131 = por %p129, %p130
      %p132 = scmp.ne.s32.totalorder %s121, %s124
      %p133 = scmp.eq.s32.totalorder %s43, 7
      %p134 = por %p132, %p133
      %p135 = scmp.ne.s32.totalorder %s124, %s125
      %p136 = scmp.eq.s32.totalorder %s43, 0
      %p137 = por %p135, %p136
      %p138 = scmp.ne.s32.totalorder %s124, %s125
      %p139 = scmp.eq.s32.totalorder %s44, 7
      %p140 = por %p138, %p139
      %p142 = scmp.ne.s32.totalorder %s125, %s141
      %p143 = scmp.eq.s32.totalorder %s44, 0
      %p144 = por %p142, %p143
      %s145 = ssub.s32 %s46, %s60
      %p146 = scmp.eq.s32.totalorder %s145, 0
      %s148 = sadd.s32 %s147, 1
      %s149 = scalar_select %p146, %s147, %s148
      %p152 = pneg %p146
      %p153 = scmp.eq.s32.totalorder %s38, 7
      %p154 = por %p152, %p153
      %p155 = scmp.ne.s32.totalorder %s147, %s150
      %p156 = scmp.eq.s32.totalorder %s38, 0
      %p157 = por %p155, %p156
      %p158 = scmp.ne.s32.totalorder %s147, %s150
      %p159 = scmp.eq.s32.totalorder %s43, 7
      %p160 = por %p158, %p159
      %p161 = scmp.ne.s32.totalorder %s150, %s151
      %p162 = scmp.eq.s32.totalorder %s43, 0
      %p163 = por %p161, %p162
      %p164 = scmp.ne.s32.totalorder %s150, %s151
      %p165 = scmp.eq.s32.totalorder %s44, 7
      %p166 = por %p164, %p165
      %p168 = scmp.ne.s32.totalorder %s151, %s167
      %p169 = scmp.eq.s32.totalorder %s44, 0
      %p170 = por %p168, %p169
      %s172 = sadd.s32 %s171, 1
      %p175 = scmp.eq.s32.totalorder %s38, 7
      %p176 = scmp.ne.s32.totalorder %s171, %s173
      %p177 = scmp.eq.s32.totalorder %s38, 0
      %p178 = por %p176, %p177
      %p179 = scmp.ne.s32.totalorder %s171, %s173
      %p180 = scmp.eq.s32.totalorder %s43, 7
      %p181 = por %p179, %p180
      %p182 = scmp.ne.s32.totalorder %s173, %s174
      %p183 = scmp.eq.s32.totalorder %s43, 0
      %p184 = por %p182, %p183
      %p185 = scmp.ne.s32.totalorder %s173, %s174
      %p186 = scmp.eq.s32.totalorder %s44, 7
      %p187 = por %p185, %p186
      %p189 = scmp.ne.s32.totalorder %s174, %s188
      %p190 = scmp.eq.s32.totalorder %s44, 0
      %p191 = por %p189, %p190
      %s192 = ssub.s32 %s45, %s64
      %p193 = scmp.eq.s32.totalorder %s192, 0
      %s195 = sadd.s32 %s194, 1
      %s196 = scalar_select %p193, %s194, %s195
      %p199 = pneg %p193
      %p200 = scmp.eq.s32.totalorder %s38, 7
      %p201 = por %p199, %p200
      %p202 = scmp.ne.s32.totalorder %s194, %s197
      %p203 = scmp.eq.s32.totalorder %s38, 0
      %p204 = por %p202, %p203
      %p205 = scmp.ne.s32.totalorder %s194, %s197
      %p206 = scmp.eq.s32.totalorder %s43, 7
      %p207 = por %p205, %p206
      %p208 = scmp.ne.s32.totalorder %s197, %s198
      %p209 = scmp.eq.s32.totalorder %s43, 0
      %p210 = por %p208, %p209
      %p211 = scmp.ne.s32.totalorder %s197, %s198
      %p212 = scmp.eq.s32.totalorder %s44, 7
      %p213 = por %p211, %p212
      %p215 = scmp.ne.s32.totalorder %s198, %s214
      %p216 = scmp.eq.s32.totalorder %s44, 0
      %p217 = por %p215, %p216
      %s218 = ssub.s32 %s45, %s64
      %p219 = scmp.eq.s32.totalorder %s218, 0
      %s221 = sadd.s32 %s220, 1
      %s222 = scalar_select %p219, %s220, %s221
      %p225 = pneg %p219
      %p226 = scmp.eq.s32.totalorder %s38, 7
      %p227 = por %p225, %p226
      %p228 = scmp.ne.s32.totalorder %s220, %s223
      %p229 = scmp.eq.s32.totalorder %s38, 0
      %p230 = por %p228, %p229
      %p231 = scmp.ne.s32.totalorder %s220, %s223
      %p232 = scmp.eq.s32.totalorder %s43, 7
      %p233 = por %p231, %p232
      %p234 = scmp.ne.s32.totalorder %s223, %s224
      %p235 = scmp.eq.s32.totalorder %s43, 0
      %p236 = por %p234, %p235
      %p237 = scmp.ne.s32.totalorder %s223, %s224
      %p238 = scmp.eq.s32.totalorder %s44, 7
      %p239 = por %p237, %p238
      %p241 = scmp.ne.s32.totalorder %s224, %s240
      %p242 = scmp.eq.s32.totalorder %s44, 0
      %p243 = por %p241, %p242
      %s244 = ssub.s32 %s45, %s64
      %p245 = scmp.eq.s32.totalorder %s244, 0
      %s247 = sadd.s32 %s246, 1
      %s248 = scalar_select %p245, %s246, %s247
      %p251 = pneg %p245
      %p252 = scmp.eq.s32.totalorder %s38, 7
      %p253 = por %p251, %p252
      %p254 = scmp.ne.s32.totalorder %s246, %s249
      %p255 = scmp.eq.s32.totalorder %s38, 0
      %p256 = por %p254, %p255
      %p257 = scmp.ne.s32.totalorder %s246, %s249
      %p258 = scmp.eq.s32.totalorder %s43, 7
      %p259 = por %p257, %p258
      %p260 = scmp.ne.s32.totalorder %s249, %s250
      %p261 = scmp.eq.s32.totalorder %s43, 0
      %p262 = por %p260, %p261
      %p263 = scmp.ne.s32.totalorder %s249, %s250
      %p264 = scmp.eq.s32.totalorder %s44, 7
      %p265 = por %p263, %p264
      %p267 = scmp.ne.s32.totalorder %s250, %s266
      %p268 = scmp.eq.s32.totalorder %s44, 0
      %p269 = por %p267, %p268
      %s270 = ssub.s32 %s45, %s64
      %p271 = scmp.eq.s32.totalorder %s270, 0
      %s273 = sadd.s32 %s272, 1
      %s274 = scalar_select %p271, %s272, %s273
      %p277 = pneg %p271
      %p278 = scmp.eq.s32.totalorder %s38, 7
      %p279 = por %p277, %p278
      %p280 = scmp.ne.s32.totalorder %s272, %s275
      %p281 = scmp.eq.s32.totalorder %s38, 0
      %p282 = por %p280, %p281
      %p283 = scmp.ne.s32.totalorder %s272, %s275
      %p284 = scmp.eq.s32.totalorder %s43, 7
      %p285 = por %p283, %p284
      %p286 = scmp.ne.s32.totalorder %s275, %s276
      %p287 = scmp.eq.s32.totalorder %s43, 0
      %p288 = por %p286, %p287
      %p289 = scmp.ne.s32.totalorder %s275, %s276
      %p290 = scmp.eq.s32.totalorder %s44, 7
      %p291 = por %p289, %p290
      %p293 = scmp.ne.s32.totalorder %s276, %s292
      %p294 = scmp.eq.s32.totalorder %s44, 0
      %p295 = por %p293, %p294
      %s296 = ssub.s32 %s45, %s64
      %p297 = scmp.eq.s32.totalorder %s296, 0
      %s299 = sadd.s32 %s298, 1
      %s300 = scalar_select %p297, %s298, %s299
      %p303 = pneg %p297
      %p304 = scmp.eq.s32.totalorder %s38, 7
      %p305 = por %p303, %p304
      %p306 = scmp.ne.s32.totalorder %s298, %s301
      %p307 = scmp.eq.s32.totalorder %s38, 0
      %p308 = por %p306, %p307
      %p309 = scmp.ne.s32.totalorder %s298, %s301
      %p310 = scmp.eq.s32.totalorder %s43, 7
      %p311 = por %p309, %p310
      %p312 = scmp.ne.s32.totalorder %s301, %s302
      %p313 = scmp.eq.s32.totalorder %s43, 0
      %p314 = por %p312, %p313
      %p315 = scmp.ne.s32.totalorder %s301, %s302
      %p316 = scmp.eq.s32.totalorder %s44, 7
      %p317 = por %p315, %p316
      %p319 = scmp.ne.s32.totalorder %s302, %s318
      %p320 = scmp.eq.s32.totalorder %s44, 0
      %p321 = por %p319, %p320
      %s322 = ssub.s32 %s45, %s64
      %p323 = scmp.eq.s32.totalorder %s322, 0
      %s325 = sadd.s32 %s324, 1
      %s326 = scalar_select %p323, %s324, %s325
      %p329 = pneg %p323
      %p330 = scmp.eq.s32.totalorder %s38, 7
      %p331 = por %p329, %p330
      %p332 = scmp.ne.s32.totalorder %s324, %s327
      %p333 = scmp.eq.s32.totalorder %s38, 0
      %p334 = por %p332, %p333
      %p335 = scmp.ne.s32.totalorder %s324, %s327
      %p336 = scmp.eq.s32.totalorder %s43, 7
      %p337 = por %p335, %p336
      %p338 = scmp.ne.s32.totalorder %s327, %s328
      %p339 = scmp.eq.s32.totalorder %s43, 0
      %p340 = por %p338, %p339
      %p341 = scmp.ne.s32.totalorder %s327, %s328
      %p342 = scmp.eq.s32.totalorder %s44, 7
      %p343 = por %p341, %p342
      %p345 = scmp.ne.s32.totalorder %s328, %s344
      %p346 = scmp.eq.s32.totalorder %s44, 0
      %p347 = por %p345, %p346
      %s348 = ssub.s32 %s45, %s64
      %p349 = scmp.eq.s32.totalorder %s348, 0
      %s351 = sadd.s32 %s350, 1
      %s352 = scalar_select %p349, %s350, %s351
      %p355 = pneg %p349
      %p356 = scmp.eq.s32.totalorder %s38, 7
      %p357 = por %p355, %p356
      %p358 = scmp.ne.s32.totalorder %s350, %s353
      %p359 = scmp.eq.s32.totalorder %s38, 0
      %p360 = por %p358, %p359
      %p361 = scmp.ne.s32.totalorder %s350, %s353
      %p362 = scmp.eq.s32.totalorder %s43, 7
      %p363 = por %p361, %p362
      %p364 = scmp.ne.s32.totalorder %s353, %s354
      %p365 = scmp.eq.s32.totalorder %s43, 0
      %p366 = por %p364, %p365
      %p367 = scmp.ne.s32.totalorder %s353, %s354
      %p368 = scmp.eq.s32.totalorder %s44, 7
      %p369 = por %p367, %p368
      %p371 = scmp.ne.s32.totalorder %s354, %s370
      %p372 = scmp.eq.s32.totalorder %s44, 0
      %p373 = por %p371, %p372
      %s374 = ssub.s32 %s45, %s64
      %s375 = ssub.s32 %s47, %s56
      %s376 = sor.u32 %s374, %s375
      %p377 = scmp.eq.s32.totalorder %s376, 0
      %s379 = sadd.s32 %s378, 1
      %s380 = scalar_select %p377, %s378, %s379
      %p383 = pneg %p377
      %p384 = scmp.eq.s32.totalorder %s38, 7
      %p385 = por %p383, %p384
      %p386 = scmp.ne.s32.totalorder %s378, %s381
      %p387 = scmp.eq.s32.totalorder %s38, 0
      %p388 = por %p386, %p387
      %p389 = scmp.ne.s32.totalorder %s378, %s381
      %p390 = scmp.eq.s32.totalorder %s43, 7
      %p391 = por %p389, %p390
      %p392 = scmp.ne.s32.totalorder %s381, %s382
      %p393 = scmp.eq.s32.totalorder %s43, 0
      %p394 = por %p392, %p393
      %p395 = scmp.ne.s32.totalorder %s381, %s382
      %p396 = scmp.eq.s32.totalorder %s44, 7
      %p397 = por %p395, %p396
      %p399 = scmp.ne.s32.totalorder %s382, %s398
      %p400 = scmp.eq.s32.totalorder %s44, 0
      %p401 = por %p399, %p400
      %s402 = ssub.s32 %s45, %s64
      %s403 = ssub.s32 %s47, %s56
      %s404 = sor.u32 %s402, %s403
      %p405 = scmp.eq.s32.totalorder %s404, 0
      %s407 = sadd.s32 %s406, 1
      %s408 = scalar_select %p405, %s406, %s407
      %p411 = pneg %p405
      %p412 = scmp.eq.s32.totalorder %s38, 7
      %p413 = por %p411, %p412
      %p414 = scmp.ne.s32.totalorder %s406, %s409
      %p415 = scmp.eq.s32.totalorder %s38, 0
      %p416 = por %p414, %p415
      %p417 = scmp.ne.s32.totalorder %s406, %s409
      %p418 = scmp.eq.s32.totalorder %s43, 7
      %p419 = por %p417, %p418
      %p420 = scmp.ne.s32.totalorder %s409, %s410
      %p421 = scmp.eq.s32.totalorder %s43, 0
      %p422 = por %p420, %p421
      %p423 = scmp.ne.s32.totalorder %s409, %s410
      %p424 = scmp.eq.s32.totalorder %s44, 7
      %p425 = por %p423, %p424
      %p427 = scmp.ne.s32.totalorder %s410, %s426
      %p428 = scmp.eq.s32.totalorder %s44, 0
      %p429 = por %p427, %p428
      %s430 = ssub.s32 %s45, %s64
      %s431 = ssub.s32 %s47, %s56
      %s432 = sor.u32 %s430, %s431
      %p433 = scmp.eq.s32.totalorder %s432, 0
      %s435 = sadd.s32 %s434, 1
      %s436 = scalar_select %p433, %s434, %s435
      %p439 = pneg %p433
      %p440 = scmp.eq.s32.totalorder %s38, 7
      %p441 = por %p439, %p440
      %p442 = scmp.ne.s32.totalorder %s434, %s437
      %p443 = scmp.eq.s32.totalorder %s38, 0
      %p444 = por %p442, %p443
      %p445 = scmp.ne.s32.totalorder %s434, %s437
      %p446 = scmp.eq.s32.totalorder %s43, 7
      %p447 = por %p445, %p446
      %p448 = scmp.ne.s32.totalorder %s437, %s438
      %p449 = scmp.eq.s32.totalorder %s43, 0
      %p450 = por %p448, %p449
      %p451 = scmp.ne.s32.totalorder %s437, %s438
      %p452 = scmp.eq.s32.totalorder %s44, 7
      %p453 = por %p451, %p452
      %p455 = scmp.ne.s32.totalorder %s438, %s454
      %p456 = scmp.eq.s32.totalorder %s44, 0
      %p457 = por %p455, %p456
      %s458 = ssub.s32 %s45, %s64
      %p459 = scmp.eq.s32.totalorder %s458, 0
      %s461 = sadd.s32 %s460, 1
      %s462 = scalar_select %p459, %s460, %s461
      %p465 = pneg %p459
      %p466 = scmp.eq.s32.totalorder %s38, 7
      %p467 = por %p465, %p466
      %p468 = scmp.ne.s32.totalorder %s460, %s463
      %p469 = scmp.eq.s32.totalorder %s38, 0
      %p470 = por %p468, %p469
      %p471 = scmp.ne.s32.totalorder %s460, %s463
      %p472 = scmp.eq.s32.totalorder %s43, 7
      %p473 = por %p471, %p472
      %p474 = scmp.ne.s32.totalorder %s463, %s464
      %p475 = scmp.eq.s32.totalorder %s43, 0
      %p476 = por %p474, %p475
      %p477 = scmp.ne.s32.totalorder %s463, %s464
      %p478 = scmp.eq.s32.totalorder %s44, 7
      %p479 = por %p477, %p478
      %p481 = scmp.ne.s32.totalorder %s464, %s480
      %p482 = scmp.eq.s32.totalorder %s44, 0
      %p483 = por %p481, %p482
      %s484 = ssub.s32 %s45, %s64
      %p485 = scmp.eq.s32.totalorder %s484, 0
      %s487 = sadd.s32 %s486, 1
      %s488 = scalar_select %p485, %s486, %s487
      %p491 = pneg %p485
      %p492 = scmp.eq.s32.totalorder %s38, 7
      %p493 = por %p491, %p492
      %p494 = scmp.ne.s32.totalorder %s486, %s489
      %p495 = scmp.eq.s32.totalorder %s38, 0
      %p496 = por %p494, %p495
      %p497 = scmp.ne.s32.totalorder %s486, %s489
      %p498 = scmp.eq.s32.totalorder %s43, 7
      %p499 = por %p497, %p498
      %p500 = scmp.ne.s32.totalorder %s489, %s490
      %p501 = scmp.eq.s32.totalorder %s43, 0
      %p502 = por %p500, %p501
      %p503 = scmp.ne.s32.totalorder %s489, %s490
      %p504 = scmp.eq.s32.totalorder %s44, 7
      %p505 = por %p503, %p504
      %p507 = scmp.ne.s32.totalorder %s490, %s506
      %p508 = scmp.eq.s32.totalorder %s44, 0
      %p509 = por %p507, %p508
      %s510 = ssub.s32 %s45, %s64
      %s511 = ssub.s32 %s46, %s60
      %s512 = sor.u32 %s510, %s511
      %p513 = scmp.eq.s32.totalorder %s512, 0
      %s515 = sadd.s32 %s514, 1
      %s516 = scalar_select %p513, %s514, %s515
      %p519 = pneg %p513
      %p520 = scmp.eq.s32.totalorder %s38, 7
      %p521 = por %p519, %p520
      %p522 = scmp.ne.s32.totalorder %s514, %s517
      %p523 = scmp.eq.s32.totalorder %s38, 0
      %p524 = por %p522, %p523
      %p525 = scmp.ne.s32.totalorder %s514, %s517
      %p526 = scmp.eq.s32.totalorder %s43, 7
      %p527 = por %p525, %p526
      %p528 = scmp.ne.s32.totalorder %s517, %s518
      %p529 = scmp.eq.s32.totalorder %s43, 0
      %p530 = por %p528, %p529
      %p531 = scmp.ne.s32.totalorder %s517, %s518
      %p532 = scmp.eq.s32.totalorder %s44, 7
      %p533 = por %p531, %p532
      %p535 = scmp.ne.s32.totalorder %s518, %s534
      %p536 = scmp.eq.s32.totalorder %s44, 0
      %p537 = por %p535, %p536
      %p538 = scmp.le.s32.totalorder 1, %s38
      %p539 = scmp.lt.s32.totalorder %s38, 9
      %p540 = pnand %p538, %p539
      %p541 = pneg %p540
      // Predicated region
      $region9: #{tpu_custom_call.1} parent=5 // pred_check
        _
      $region10: #{tpu_custom_call.1} parent=5 // pred_check_branch
        %543 = sbr.rel (%p540) target = $region12
      $region11: #{tpu_custom_call.1} parent=5 // pred_region
        %s544 = ssub.s32 %s38, 1
        // Predicated region
        $region13: #{tpu_custom_call.1} parent=11 // pred_check
          %p545 = pneg %p184
        $region14: #{tpu_custom_call.1} parent=11 // pred_check_branch
          %547 = sbr.rel (%p545) target = $region16
        $region15: #{tpu_custom_call.1} parent=11 // pred_region
          _
        $region16: #{tpu_custom_call.1} parent=11 // pred_fallthru
          _
      $region12: #{tpu_custom_call.1} parent=5 // pred_fallthru
        _
      %p548 = scmp.lt.s32.totalorder %s38, 8
      // Predicated region
      $region17: #{tpu_custom_call.1} parent=5 // pred_check
        %p549 = pneg %p548
      $region18: #{tpu_custom_call.1} parent=5 // pred_check_branch
        %551 = sbr.rel (%p549) target = $region20
      $region19: #{tpu_custom_call.1} parent=5 // pred_region
        // Predicated region
        $region21: #{tpu_custom_call.1} parent=19 // pred_check
          %p552 = pneg %p79
        $region22: #{tpu_custom_call.1} parent=19 // pred_check_branch
          %554 = sbr.rel (%p552) target = $region24
        $region23: #{tpu_custom_call.1} parent=19 // pred_region
          %p555 = scmp.lt.s32.totalorder %s45, 1
          %s556 = scalar_select %p555, %s45, 1
          %p557 = scmp.lt.s32.totalorder %s46, 1
          %s558 = scalar_select %p557, %s46, 1
          %s559 = smul.addr %s556, 2
          %s560 = sadd.s32 %s558, %s559
          %s561 = smul.addr %s560, 8
          %s562 = scalar_lea.vmem %s0, %s561
        $region24: #{tpu_custom_call.1} parent=19 // pred_fallthru
          _
        // Predicated region
        $region25: #{tpu_custom_call.1} parent=19 // pred_check
          %p563 = pneg %p105
        $region26: #{tpu_custom_call.1} parent=19 // pred_check_branch
          %565 = sbr.rel (%p563) target = $region28
        $region27: #{tpu_custom_call.1} parent=19 // pred_region
          %s566 = sand.u32 %s95, 1
          %s567 = scalar_lea.sflag [#allocation6], %s566
          %s568 = sand.u32 %s95, 1
          %s569 = smul.addr %s568, 8
          %s570 = scalar_lea.vmem [#allocation5], %s569
          %s572 = ssub.s32 128, 128
          %573 = vsyncadd %s567, %s572
          %s574 = smul.addr %s46, 128
          %s575 = scalar_lea.hbm %s1, %s574
          %s577 = sshll.u32 %s570, 4
          %s578 = int_to_ptr.vmem [resolvable:$true] %s577
          %580 = dma.hbm_to_vmem [thread:$0]  %s575, 128, %s578, %s567
        $region28: #{tpu_custom_call.1} parent=19 // pred_fallthru
          _
        // Predicated region
        $region29: #{tpu_custom_call.1} parent=19 // pred_check
          %p581 = pneg %p131
        $region30: #{tpu_custom_call.1} parent=19 // pred_check_branch
          %583 = sbr.rel (%p581) target = $region32
        $region31: #{tpu_custom_call.1} parent=19 // pred_region
          %s584 = sand.u32 %s38, 1
          %s585 = scalar_lea.sflag [#allocation9], %s584
          %s586 = sand.u32 %s121, 1
          %s587 = smul.addr %s586, 8
          %s588 = scalar_lea.vmem [#allocation8], %s587
          %s590 = ssub.s32 128, 128
          %591 = vsyncadd %s585, %s590
          %s592 = smul.addr %s46, 128
          %s593 = scalar_lea.hbm %s2, %s592
          %s595 = sshll.u32 %s588, 4
          %s596 = int_to_ptr.vmem [resolvable:$true] %s595
          %598 = dma.hbm_to_vmem [thread:$0]  %s593, 128, %s596, %s585
        $region32: #{tpu_custom_call.1} parent=19 // pred_fallthru
          _
        // Predicated region
        $region33: #{tpu_custom_call.1} parent=19 // pred_check
          %p599 = pneg %p157
        $region34: #{tpu_custom_call.1} parent=19 // pred_check_branch
          %601 = sbr.rel (%p599) target = $region36
        $region35: #{tpu_custom_call.1} parent=19 // pred_region
          %p602 = scmp.lt.s32.totalorder %s46, 1
          %s603 = scalar_select %p602, %s46, 1
          %s604 = smul.addr %s603, 8
          %s605 = scalar_lea.vmem %s3, %s604
        $region36: #{tpu_custom_call.1} parent=19 // pred_fallthru
          _
        // Predicated region
        $region37: #{tpu_custom_call.1} parent=19 // pred_check
          %p606 = pneg %p204
        $region38: #{tpu_custom_call.1} parent=19 // pred_check_branch
          %608 = sbr.rel (%p606) target = $region40
        $region39: #{tpu_custom_call.1} parent=19 // pred_region
          %p609 = scmp.lt.s32.totalorder %s45, 1
          %s610 = scalar_select %p609, %s45, 1
          %s611 = smul.addr %s610, 4
          %s612 = scalar_lea.vmem %s5, %s611
        $region40: #{tpu_custom_call.1} parent=19 // pred_fallthru
          _
        // Predicated region
        $region41: #{tpu_custom_call.1} parent=19 // pred_check
          %p613 = pneg %p230
        $region42: #{tpu_custom_call.1} parent=19 // pred_check_branch
          %615 = sbr.rel (%p613) target = $region44
        $region43: #{tpu_custom_call.1} parent=19 // pred_region
          %s616 = sand.u32 %s38, 1
          %s617 = scalar_lea.sflag [#allocation9], %s616
          %s618 = sand.u32 %s220, 1
          %s619 = smul.addr %s618, 8
          %s620 = scalar_lea.vmem [#allocation10], %s619
          %s622 = ssub.s32 128, 128
          %623 = vsyncadd %s617, %s622
          %s624 = smul.addr %s45, 2
          %s625 = smul.addr %s624, 64
          %s626 = scalar_lea.hbm %s6, %s625
          %s627 = sshll.u32 %s620, 4
          %s628 = int_to_ptr.vmem [resolvable:$true] %s627
          %633 = dma.hbm_to_vmem [thread:$0]  %s626, 128, %s628, %s617, 64, 64, 4
        $region44: #{tpu_custom_call.1} parent=19 // pred_fallthru
          _
        // Predicated region
        $region45: #{tpu_custom_call.1} parent=19 // pred_check
          %p634 = pneg %p256
        $region46: #{tpu_custom_call.1} parent=19 // pred_check_branch
          %636 = sbr.rel (%p634) target = $region48
        $region47: #{tpu_custom_call.1} parent=19 // pred_region
          %s637 = sand.u32 %s38, 1
          %s638 = scalar_lea.sflag [#allocation12], %s637
          %s639 = sand.u32 %s246, 1
          %s640 = scalar_lea.vmem [#allocation11], %s639
          %s642 = ssub.s32 16, 16
          %643 = vsyncadd %s638, %s642
          %s644 = smul.addr %s45, 16
          %s645 = scalar_lea.hbm %s7, %s644
          %s647 = sshll.u32 %s640, 4
          %s648 = int_to_ptr.vmem [resolvable:$true] %s647
          %650 = dma.hbm_to_vmem [thread:$0]  %s645, 16, %s648, %s638
        $region48: #{tpu_custom_call.1} parent=19 // pred_fallthru
          _
        // Predicated region
        $region49: #{tpu_custom_call.1} parent=19 // pred_check
          %p651 = pneg %p282
        $region50: #{tpu_custom_call.1} parent=19 // pred_check_branch
          %653 = sbr.rel (%p651) target = $region52
        $region51: #{tpu_custom_call.1} parent=19 // pred_region
          %s654 = sand.u32 %s38, 1
          %s655 = scalar_lea.sflag [#allocation12], %s654
          %s656 = sand.u32 %s272, 1
          %s657 = smul.addr %s656, 4
          %s658 = scalar_lea.vmem [#allocation13], %s657
          %s660 = ssub.s32 64, 64
          %661 = vsyncadd %s655, %s660
          %s662 = smul.addr %s45, 64
          %s663 = scalar_lea.hbm %s8, %s662
          %s665 = sshll.u32 %s658, 4
          %s666 = int_to_ptr.vmem [resolvable:$true] %s665
          %668 = dma.hbm_to_vmem [thread:$0]  %s663, 64, %s666, %s655
        $region52: #{tpu_custom_call.1} parent=19 // pred_fallthru
          _
        // Predicated region
        $region53: #{tpu_custom_call.1} parent=19 // pred_check
          %p669 = pneg %p308
        $region54: #{tpu_custom_call.1} parent=19 // pred_check_branch
          %671 = sbr.rel (%p669) target = $region56
        $region55: #{tpu_custom_call.1} parent=19 // pred_region
          %p672 = scmp.lt.s32.totalorder %s45, 1
          %s673 = scalar_select %p672, %s45, 1
          %s674 = smul.addr %s673, 4
          %s675 = smul.addr %s674, 4
          %s676 = scalar_lea.vmem %s9, %s675
        $region56: #{tpu_custom_call.1} parent=19 // pred_fallthru
          _
        // Predicated region
        $region57: #{tpu_custom_call.1} parent=19 // pred_check
          %p677 = pneg %p334
        $region58: #{tpu_custom_call.1} parent=19 // pred_check_branch
          %679 = sbr.rel (%p677) target = $region60
        $region59: #{tpu_custom_call.1} parent=19 // pred_region
          %p680 = scmp.lt.s32.totalorder %s45, 1
          %s681 = scalar_select %p680, %s45, 1
          %s682 = smul.addr %s681, 8
          %s683 = smul.addr %s682, 4
          %s684 = scalar_lea.vmem %s10, %s683
        $region60: #{tpu_custom_call.1} parent=19 // pred_fallthru
          _
        // Predicated region
        $region61: #{tpu_custom_call.1} parent=19 // pred_check
          %p685 = pneg %p360
        $region62: #{tpu_custom_call.1} parent=19 // pred_check_branch
          %687 = sbr.rel (%p685) target = $region64
        $region63: #{tpu_custom_call.1} parent=19 // pred_region
          %s688 = sand.u32 %s350, 1
          %s689 = scalar_lea.sflag [#allocation15], %s688
          %s690 = sand.u32 %s350, 1
          %s691 = scalar_lea.vmem [#allocation14], %s690
          %s693 = ssub.s32 16, 16
          %694 = vsyncadd %s689, %s693
          %s695 = smul.addr %s45, 16
          %s696 = scalar_lea.hbm %s11, %s695
          %s698 = sshll.u32 %s691, 4
          %s699 = int_to_ptr.vmem [resolvable:$true] %s698
          %701 = dma.hbm_to_vmem [thread:$0]  %s696, 16, %s699, %s689
        $region64: #{tpu_custom_call.1} parent=19 // pred_fallthru
          _
        // Predicated region
        $region65: #{tpu_custom_call.1} parent=19 // pred_check
          %p702 = pneg %p388
        $region66: #{tpu_custom_call.1} parent=19 // pred_check_branch
          %704 = sbr.rel (%p702) target = $region68
        $region67: #{tpu_custom_call.1} parent=19 // pred_region
          %p705 = scmp.lt.s32.totalorder %s45, 1
          %s706 = scalar_select %p705, %s45, 1
          %p707 = scmp.lt.s32.totalorder %s47, 1
          %s708 = scalar_select %p707, %s47, 1
          %s709 = smul.addr %s708, 4
          %s710 = smul.addr %s706, 8
          %s711 = sadd.s32 %s709, %s710
          %s712 = smul.addr %s711, 4
          %s713 = scalar_lea.vmem %s12, %s712
        $region68: #{tpu_custom_call.1} parent=19 // pred_fallthru
          _
        // Predicated region
        $region69: #{tpu_custom_call.1} parent=19 // pred_check
          %p714 = pneg %p416
        $region70: #{tpu_custom_call.1} parent=19 // pred_check_branch
          %716 = sbr.rel (%p714) target = $region72
        $region71: #{tpu_custom_call.1} parent=19 // pred_region
          %p717 = scmp.lt.s32.totalorder %s45, 1
          %s718 = scalar_select %p717, %s45, 1
          %p719 = scmp.lt.s32.totalorder %s47, 1
          %s720 = scalar_select %p719, %s47, 1
          %s721 = smul.addr %s720, 4
          %s722 = smul.addr %s718, 8
          %s723 = sadd.s32 %s721, %s722
          %s724 = smul.addr %s723, 4
          %s725 = scalar_lea.vmem %s13, %s724
        $region72: #{tpu_custom_call.1} parent=19 // pred_fallthru
          _
        // Predicated region
        $region73: #{tpu_custom_call.1} parent=19 // pred_check
          %p726 = pneg %p444
        $region74: #{tpu_custom_call.1} parent=19 // pred_check_branch
          %728 = sbr.rel (%p726) target = $region76
        $region75: #{tpu_custom_call.1} parent=19 // pred_region
          %p729 = scmp.lt.s32.totalorder %s45, 1
          %s730 = scalar_select %p729, %s45, 1
          %p731 = scmp.lt.s32.totalorder %s47, 1
          %s732 = scalar_select %p731, %s47, 1
          %s733 = smul.addr %s730, 2
          %s734 = sadd.s32 %s732, %s733
          %s735 = smul.addr %s734, 4
          %s736 = scalar_lea.vmem %s14, %s735
        $region76: #{tpu_custom_call.1} parent=19 // pred_fallthru
          _
        // Predicated region
        $region77: #{tpu_custom_call.1} parent=19 // pred_check
          %p737 = pneg %p470
        $region78: #{tpu_custom_call.1} parent=19 // pred_check_branch
          %739 = sbr.rel (%p737) target = $region80
        $region79: #{tpu_custom_call.1} parent=19 // pred_region
          %p740 = scmp.lt.s32.totalorder %s45, 1
          %s741 = scalar_select %p740, %s45, 1
          %s742 = smul.addr %s741, 4
          %s743 = smul.addr %s742, 4
          %s744 = scalar_lea.vmem %s15, %s743
        $region80: #{tpu_custom_call.1} parent=19 // pred_fallthru
          _
        // Predicated region
        $region81: #{tpu_custom_call.1} parent=19 // pred_check
          %p745 = pneg %p496
        $region82: #{tpu_custom_call.1} parent=19 // pred_check_branch
          %747 = sbr.rel (%p745) target = $region84
        $region83: #{tpu_custom_call.1} parent=19 // pred_region
          %p748 = scmp.lt.s32.totalorder %s45, 1
          %s749 = scalar_select %p748, %s45, 1
          %s750 = scalar_lea.vmem %s16, %s749
        $region84: #{tpu_custom_call.1} parent=19 // pred_fallthru
          _
      $region20: #{tpu_custom_call.1} parent=5 // pred_fallthru
        _
      %p751 = scmp.le.s32.totalorder 1, %s38
      %p752 = scmp.lt.s32.totalorder %s38, 9
      %p753 = pnand %p751, %p752
      %p754 = pneg %p753
      // Predicated region
      $region85: #{tpu_custom_call.1} parent=5 // pred_check
        _
      $region86: #{tpu_custom_call.1} parent=5 // pred_check_branch
        %756 = sbr.rel (%p753) target = $region88
      $region87: #{tpu_custom_call.1} parent=5 // pred_region
        %s757 = ssub.s32 %s38, 1
        %s758 = sand.u32 %s98, 1
        %s759 = scalar_lea.sflag [#allocation6], %s758
        %s760 = sand.u32 %s98, 1
        %s761 = smul.addr %s760, 8
        %s762 = scalar_lea.vmem [#allocation5], %s761
        // Predicated region
        $region89: #{tpu_custom_call.1} parent=87 // pred_check
          %p763 = pneg %p111
        $region90: #{tpu_custom_call.1} parent=87 // pred_check_branch
          %765 = sbr.rel (%p763) target = $region92
        $region91: #{tpu_custom_call.1} parent=87 // pred_region
          %766 = dma.done %s759, 128
        $region92: #{tpu_custom_call.1} parent=87 // pred_fallthru
          _
        %s767 = sand.u32 %s43, 1
        %s768 = scalar_lea.sflag [#allocation9], %s767
        %s769 = sand.u32 %s124, 1
        %s770 = smul.addr %s769, 8
        %s771 = scalar_lea.vmem [#allocation8], %s770
        // Predicated region
        $region93: #{tpu_custom_call.1} parent=87 // pred_check
          %p772 = pneg %p137
        $region94: #{tpu_custom_call.1} parent=87 // pred_check_branch
          %774 = sbr.rel (%p772) target = $region96
        $region95: #{tpu_custom_call.1} parent=87 // pred_region
          %775 = dma.done %s768, 128
        $region96: #{tpu_custom_call.1} parent=87 // pred_fallthru
          _
        %s776 = sand.u32 %s43, 1
        %s777 = scalar_lea.sflag [#allocation9], %s776
        %s778 = sand.u32 %s223, 1
        %s779 = smul.addr %s778, 8
        %s780 = scalar_lea.vmem [#allocation10], %s779
        // Predicated region
        $region97: #{tpu_custom_call.1} parent=87 // pred_check
          %p781 = pneg %p236
        $region98: #{tpu_custom_call.1} parent=87 // pred_check_branch
          %783 = sbr.rel (%p781) target = $region100
        $region99: #{tpu_custom_call.1} parent=87 // pred_region
          %784 = dma.done %s777, 128
        $region100: #{tpu_custom_call.1} parent=87 // pred_fallthru
          _
        %s785 = sand.u32 %s43, 1
        %s786 = scalar_lea.sflag [#allocation12], %s785
        %s787 = sand.u32 %s249, 1
        %s788 = scalar_lea.vmem [#allocation11], %s787
        // Predicated region
        $region101: #{tpu_custom_call.1} parent=87 // pred_check
          %p789 = pneg %p262
        $region102: #{tpu_custom_call.1} parent=87 // pred_check_branch
          %791 = sbr.rel (%p789) target = $region104
        $region103: #{tpu_custom_call.1} parent=87 // pred_region
          %792 = dma.done %s786, 16
        $region104: #{tpu_custom_call.1} parent=87 // pred_fallthru
          _
        %s793 = sand.u32 %s43, 1
        %s794 = scalar_lea.sflag [#allocation12], %s793
        %s795 = sand.u32 %s275, 1
        %s796 = smul.addr %s795, 4
        %s797 = scalar_lea.vmem [#allocation13], %s796
        // Predicated region
        $region105: #{tpu_custom_call.1} parent=87 // pred_check
          %p798 = pneg %p288
        $region106: #{tpu_custom_call.1} parent=87 // pred_check_branch
          %800 = sbr.rel (%p798) target = $region108
        $region107: #{tpu_custom_call.1} parent=87 // pred_region
          %801 = dma.done %s794, 64
        $region108: #{tpu_custom_call.1} parent=87 // pred_fallthru
          _
        %s802 = sand.u32 %s353, 1
        %s803 = scalar_lea.sflag [#allocation15], %s802
        %s804 = sand.u32 %s353, 1
        %s805 = scalar_lea.vmem [#allocation14], %s804
        // Predicated region
        $region109: #{tpu_custom_call.1} parent=87 // pred_check
          %p806 = pneg %p366
        $region110: #{tpu_custom_call.1} parent=87 // pred_check_branch
          %808 = sbr.rel (%p806) target = $region112
        $region111: #{tpu_custom_call.1} parent=87 // pred_region
          %809 = dma.done %s803, 16
        $region112: #{tpu_custom_call.1} parent=87 // pred_fallthru
          _
        %p810 = scmp.lt.s32.totalorder %s48, 1
        %s811 = scalar_select %p810, %s48, 1
        %p812 = scmp.lt.s32.totalorder %s49, 1
        %s813 = scalar_select %p812, %s49, 1
        %s814 = smul.addr %s811, 2
        %s815 = sadd.s32 %s813, %s814
        %s816 = smul.addr %s815, 8
        %s817 = scalar_lea.vmem %s0, %s816
        %p818 = pneg %p85
        %p819 = pneg %p82
        %s820 = sand.u32 %s98, 1
        %s821 = scalar_lea.sflag [#allocation6], %s820
        %s822 = sand.u32 %s98, 1
        %s823 = smul.addr %s822, 8
        %s824 = scalar_lea.vmem [#allocation5], %s823
        %p825 = pneg %p111
        %p826 = pneg %p108
        %s827 = sand.u32 %s43, 1
        %s828 = scalar_lea.sflag [#allocation9], %s827
        %s829 = sand.u32 %s124, 1
        %s830 = smul.addr %s829, 8
        %s831 = scalar_lea.vmem [#allocation8], %s830
        %p832 = pneg %p137
        %p833 = pneg %p134
        %p834 = scmp.lt.s32.totalorder %s49, 1
        %s835 = scalar_select %p834, %s49, 1
        %s836 = smul.addr %s835, 8
        %s837 = scalar_lea.vmem %s3, %s836
        %p838 = pneg %p163
        %p839 = pneg %p160
        %p840 = pneg %p184
        %p841 = pneg %p181
        %p842 = scmp.lt.s32.totalorder %s48, 1
        %s843 = scalar_select %p842, %s48, 1
        %s844 = smul.addr %s843, 4
        %s845 = scalar_lea.vmem %s5, %s844
        %p846 = pneg %p210
        %p847 = pneg %p207
        %s848 = sand.u32 %s43, 1
        %s849 = scalar_lea.sflag [#allocation9], %s848
        %s850 = sand.u32 %s223, 1
        %s851 = smul.addr %s850, 8
        %s852 = scalar_lea.vmem [#allocation10], %s851
        %p853 = pneg %p236
        %p854 = pneg %p233
        %s855 = sand.u32 %s43, 1
        %s856 = scalar_lea.sflag [#allocation12], %s855
        %s857 = sand.u32 %s249, 1
        %s858 = scalar_lea.vmem [#allocation11], %s857
        %p859 = pneg %p262
        %p860 = pneg %p259
        %s861 = sand.u32 %s43, 1
        %s862 = scalar_lea.sflag [#allocation12], %s861
        %s863 = sand.u32 %s275, 1
        %s864 = smul.addr %s863, 4
        %s865 = scalar_lea.vmem [#allocation13], %s864
        %p866 = pneg %p288
        %p867 = pneg %p285
        %p868 = scmp.lt.s32.totalorder %s48, 1
        %s869 = scalar_select %p868, %s48, 1
        %s870 = smul.addr %s869, 4
        %s871 = smul.addr %s870, 4
        %s872 = scalar_lea.vmem %s9, %s871
        %p873 = pneg %p314
        %p874 = pneg %p311
        %p875 = scmp.lt.s32.totalorder %s48, 1
        %s876 = scalar_select %p875, %s48, 1
        %s877 = smul.addr %s876, 8
        %s878 = smul.addr %s877, 4
        %s879 = scalar_lea.vmem %s10, %s878
        %p880 = pneg %p340
        %p881 = pneg %p337
        %s882 = sand.u32 %s353, 1
        %s883 = scalar_lea.sflag [#allocation15], %s882
        %s884 = sand.u32 %s353, 1
        %s885 = scalar_lea.vmem [#allocation14], %s884
        %p886 = pneg %p366
        %p887 = pneg %p363
        %p888 = scmp.lt.s32.totalorder %s48, 1
        %s889 = scalar_select %p888, %s48, 1
        %p890 = scmp.lt.s32.totalorder %s50, 1
        %s891 = scalar_select %p890, %s50, 1
        %s892 = smul.addr %s891, 4
        %s893 = smul.addr %s889, 8
        %s894 = sadd.s32 %s892, %s893
        %s895 = smul.addr %s894, 4
        %s896 = scalar_lea.vmem %s12, %s895
        %p897 = pneg %p394
        %p898 = pneg %p391
        %p899 = scmp.lt.s32.totalorder %s48, 1
        %s900 = scalar_select %p899, %s48, 1
        %p901 = scmp.lt.s32.totalorder %s50, 1
        %s902 = scalar_select %p901, %s50, 1
        %s903 = smul.addr %s902, 4
        %s904 = smul.addr %s900, 8
        %s905 = sadd.s32 %s903, %s904
        %s906 = smul.addr %s905, 4
        %s907 = scalar_lea.vmem %s13, %s906
        %p908 = pneg %p422
        %p909 = pneg %p419
        %p910 = scmp.lt.s32.totalorder %s48, 1
        %s911 = scalar_select %p910, %s48, 1
        %p912 = scmp.lt.s32.totalorder %s50, 1
        %s913 = scalar_select %p912, %s50, 1
        %s914 = smul.addr %s911, 2
        %s915 = sadd.s32 %s913, %s914
        %s916 = smul.addr %s915, 4
        %s917 = scalar_lea.vmem %s14, %s916
        %p918 = pneg %p450
        %p919 = pneg %p447
        %p920 = scmp.lt.s32.totalorder %s48, 1
        %s921 = scalar_select %p920, %s48, 1
        %s922 = smul.addr %s921, 4
        %s923 = smul.addr %s922, 4
        %s924 = scalar_lea.vmem %s15, %s923
        %p925 = pneg %p476
        %p926 = pneg %p473
        %p927 = scmp.lt.s32.totalorder %s48, 1
        %s928 = scalar_select %p927, %s48, 1
        %s929 = scalar_lea.vmem %s16, %s928
        %p930 = pneg %p502
        %p931 = pneg %p499
        %p932 = pneg %p530
        %p933 = pneg %p527
        %s934 = sand.u32 %s517, 1
        %s935 = scalar_lea.sflag [#allocation7], %s934
        %s936 = sand.u32 %s517, 1
        %s937 = smul.addr %s936, 8
        %s938 = scalar_lea.vmem [#allocation16], %s937
        %p939 = scmp.lt.s32.totalorder %s48, 1
        %s940 = scalar_select %p939, %s48, 1
        %p941 = scmp.lt.s32.totalorder %s49, 1
        %s942 = scalar_select %p941, %s49, 1
        %s943 = smul.addr %s940, 2
        %s944 = sadd.s32 %s942, %s943
        %s945 = smul.addr %s944, 8
        %s946 = scalar_lea.vmem %s0, %s945
        %p947 = scmp.lt.s32.totalorder %s49, 1
        %s948 = scalar_select %p947, %s49, 1
        %s949 = smul.addr %s948, 8
        %s950 = scalar_lea.vmem %s3, %s949
        %p951 = scmp.lt.s32.totalorder %s48, 1
        %s952 = scalar_select %p951, %s48, 1
        %s953 = smul.addr %s952, 4
        %s954 = scalar_lea.vmem %s5, %s953
        %p955 = scmp.lt.s32.totalorder %s48, 1
        %s956 = scalar_select %p955, %s48, 1
        %s957 = smul.addr %s956, 4
        %s958 = smul.addr %s957, 4
        %s959 = scalar_lea.vmem %s9, %s958
        %p960 = scmp.lt.s32.totalorder %s48, 1
        %s961 = scalar_select %p960, %s48, 1
        %s962 = smul.addr %s961, 8
        %s963 = smul.addr %s962, 4
        %s964 = scalar_lea.vmem %s10, %s963
        %p965 = scmp.lt.s32.totalorder %s48, 1
        %s966 = scalar_select %p965, %s48, 1
        %p967 = scmp.lt.s32.totalorder %s50, 1
        %s968 = scalar_select %p967, %s50, 1
        %s969 = smul.addr %s968, 4
        %s970 = smul.addr %s966, 8
        %s971 = sadd.s32 %s969, %s970
        %s972 = smul.addr %s971, 4
        %s973 = scalar_lea.vmem %s12, %s972
        %p974 = scmp.lt.s32.totalorder %s48, 1
        %s975 = scalar_select %p974, %s48, 1
        %p976 = scmp.lt.s32.totalorder %s50, 1
        %s977 = scalar_select %p976, %s50, 1
        %s978 = smul.addr %s977, 4
        %s979 = smul.addr %s975, 8
        %s980 = sadd.s32 %s978, %s979
        %s981 = smul.addr %s980, 4
        %s982 = scalar_lea.vmem %s13, %s981
        %p983 = scmp.lt.s32.totalorder %s48, 1
        %s984 = scalar_select %p983, %s48, 1
        %p985 = scmp.lt.s32.totalorder %s50, 1
        %s986 = scalar_select %p985, %s50, 1
        %s987 = smul.addr %s984, 2
        %s988 = sadd.s32 %s986, %s987
        %s989 = smul.addr %s988, 4
        %s990 = scalar_lea.vmem %s14, %s989
        %p991 = scmp.lt.s32.totalorder %s48, 1
        %s992 = scalar_select %p991, %s48, 1
        %s993 = smul.addr %s992, 4
        %s994 = smul.addr %s993, 4
        %s995 = scalar_lea.vmem %s15, %s994
        %p996 = scmp.lt.s32.totalorder %s48, 1
        %s997 = scalar_select %p996, %s48, 1
        %s998 = scalar_lea.vmem %s16, %s997
        %p1000 = scmp.eq.s32.totalorder %s50, 0
        // Predicated region
        $region113: #{tpu_custom_call.1} parent=87 // pred_check
          %p1001 = pneg %p1000
        $region114: #{tpu_custom_call.1} parent=87 // pred_check_branch
          %1003 = sbr.rel (%p1001) target = $region116
        $region115: #{tpu_custom_call.1} parent=87 // pred_region
          %v1004 = vld [vmem:[%s946] sm:$0xff]
          %v1005 = vpack.c.bf16 %v1004, %v1004
          %v1006 = vld [vmem:[%s780] sm:$0xf]
          %v1007 = vld [vmem:[%s780 + $0x4] sm:$0xf]
          %v1008 = vld [vmem:[%s788] sm:$0x1]
          %v1010 = vlaneseq
          %v1011 = vshrl.u32 %v1010, 7
          %v1012 = vsub.s32 0, %v1011
          %v1013 = vrot.slane %v1008, %v1012
          %v1017 = vunpack.c.l.b16 %v1006
          %v1018 = vunpack.c.l.b16 %v1007
          %v1019 = vpack.c.b16 %v1018, %v1017
          %vm1021 = vcmask 130048
          %v1023 = vsel %vm1021, %v1005, 0
          %1025 = vmatprep.subr.bf16.mxu0 0
          %1026 = vmatpush1.bf16.msra.mxu0 0
          %1027 = vmatprep.subr.bf16.mxu0 0
          %1028 = vmatpush1.bf16.msra.mxu0 0
          %1029 = vmatprep.subr.bf16.mxu0 0
          %1030 = vmatpush1.bf16.msra.mxu0 0
          %1031 = vmatprep.subr.bf16.mxu0 0
          %1032 = vmatpush1.bf16.msra.mxu0 0
          %1033 = vmatprep.subr.bf16.mxu0 0
          %1034 = vmatpush1.bf16.msra.mxu0 0
          %1035 = vmatprep.subr.bf16.mxu0 0
          %1036 = vmatpush1.bf16.msra.mxu0 0
          %1037 = vmatprep.subr.bf16.mxu0 0
          %1038 = vmatpush1.bf16.msra.mxu0 0
          %1039 = vmatprep.subr.bf16.mxu0 0
          %1040 = vmatpush1.bf16.msra.mxu0 %v1019
          %1041 = vmatprep.subr.bf16.mxu0 0
          %1042 = vmatpush2.bf16.msra.mxu0 0
          %1043 = vmatprep.subr.bf16.mxu0 0
          %1044 = vmatpush2.bf16.msra.mxu0 0
          %1045 = vmatprep.subr.bf16.mxu0 0
          %1046 = vmatpush2.bf16.msra.mxu0 0
          %1047 = vmatprep.subr.bf16.mxu0 0
          %1048 = vmatpush2.bf16.msra.mxu0 0
          %1049 = vmatprep.subr.bf16.mxu0 0
          %1050 = vmatpush2.bf16.msra.mxu0 0
          %1051 = vmatprep.subr.bf16.mxu0 0
          %1052 = vmatpush2.bf16.msra.mxu0 0
          %1053 = vmatprep.subr.bf16.mxu0 0
          %1054 = vmatpush2.bf16.msra.mxu0 0
          %1055 = vmatprep.subr.bf16.mxu0 0
          %1056 = vmatpush2.bf16.msra.mxu0 0
          %1057 = vmatprep.mubr.bf16.mxu0 0
          %1058 = vmatmul.mubr.bf16.gmra.mxu0 %v1023
          %v1059 = vpop.f32.mrf.mxu0
          %v1060 = vadd.f32 %v1013, %v1059
          %v1061 = vpop.f32.mrf.mxu0
          %v1062 = vpop.f32.mrf.mxu0
          %v1063 = vpop.f32.mrf.mxu0
          %1064 = vdwg.mxu0
          %vm1065 = vcmask 261120
          %1066 = vst.msk [vmem:[#allocation2] sm:$0xff] %vm1065, %v1060
          %1067 = vst.msk [vmem:[#allocation3] sm:$0xff] %vm1065, %v1060
          %v1068 = vld [vmem:[%s762] sm:$0xff]
          %v1069 = vpack.c.bf16 %v1068, %v1068
          %v1070 = vld [vmem:[%s797] sm:$0xf]
          %vm1071 = vcmask 64512
          %v1073 = vsel %vm1071, %v1069, 0
          %vm1075 = vcmask 1043456
          %v1077 = vsel %vm1075, %v1070, 0
          %1079 = vmatprep.subr.bf16.mxu0 0
          %1080 = vmatpush1.bf16.msra.mxu0 0
          %1081 = vmatprep.subr.bf16.mxu0 0
          %1082 = vmatpush1.bf16.msra.mxu0 0
          %1083 = vmatprep.subr.bf16.mxu0 0
          %1084 = vmatpush1.bf16.msra.mxu0 0
          %1085 = vmatprep.subr.bf16.mxu0 0
          %1086 = vmatpush1.bf16.msra.mxu0 0
          %1087 = vmatprep.subr.bf16.mxu0 0
          %1088 = vmatpush1.bf16.msra.mxu0 0
          %1089 = vmatprep.subr.bf16.mxu0 0
          %1090 = vmatpush1.bf16.msra.mxu0 0
          %1091 = vmatprep.subr.bf16.mxu0 0
          %1092 = vmatpush1.bf16.msra.mxu0 0
          %1093 = vmatprep.subr.bf16.mxu0 0
          %1094 = vmatpush1.bf16.msra.mxu0 %v1077
          %1095 = vmatprep.subr.bf16.mxu0 0
          %1096 = vmatpush2.bf16.msra.mxu0 0
          %1097 = vmatprep.subr.bf16.mxu0 0
          %1098 = vmatpush2.bf16.msra.mxu0 0
          %1099 = vmatprep.subr.bf16.mxu0 0
          %1100 = vmatpush2.bf16.msra.mxu0 0
          %1101 = vmatprep.subr.bf16.mxu0 0
          %1102 = vmatpush2.bf16.msra.mxu0 0
          %1103 = vmatprep.subr.bf16.mxu0 0
          %1104 = vmatpush2.bf16.msra.mxu0 0
          %1105 = vmatprep.subr.bf16.mxu0 0
          %1106 = vmatpush2.bf16.msra.mxu0 0
          %1107 = vmatprep.subr.bf16.mxu0 0
          %1108 = vmatpush2.bf16.msra.mxu0 0
          %1109 = vmatprep.subr.bf16.mxu0 0
          %1110 = vmatpush2.bf16.msra.mxu0 0
          %1111 = vmatprep.mubr.bf16.mxu0 0
          %1112 = vmatmul.mubr.bf16.gmra.mxu0 %v1073
          %v1113 = vpop.f32.mrf.mxu0
          %v1114 = vadd.f32 0.0, %v1113
          %v1115 = vpop.f32.mrf.mxu0
          %v1116 = vpop.f32.mrf.mxu0
          %v1117 = vpop.f32.mrf.mxu0
          %1118 = vdwg.mxu0
          %v1119 = vld [vmem:[%s4] sm:$0xf]
          %v1120 = vld [vmem:[%s4 + $0x4] sm:$0xf]
          %v1121 = vld [vmem:[%s4 + $0x8] sm:$0xf]
          %v1122 = vld [vmem:[%s4 + $0xc] sm:$0xf]
          %v1123 = vld [vmem:[%s4 + $0x10] sm:$0xf]
          %v1124 = vld [vmem:[%s4 + $0x14] sm:$0xf]
          %v1125 = vld [vmem:[%s4 + $0x18] sm:$0xf]
          %v1126 = vld [vmem:[%s4 + $0x1c] sm:$0xf]
          %v1127 = vld [vmem:[%s959] sm:$0xf]
          %v1128 = vld [vmem:[%s959 + $0x4] sm:$0xf]
          %v1129 = vld [vmem:[%s959 + $0x8] sm:$0xf]
          %v1130 = vld [vmem:[%s959 + $0xc] sm:$0xf]
          %v1139 = vunpack.c.l.b16 %v1119
          %v1140 = vunpack.c.l.b16 %v1120
          %v1141 = vunpack.c.l.b16 %v1121
          %v1142 = vunpack.c.l.b16 %v1122
          %v1143 = vunpack.c.l.b16 %v1123
          %v1144 = vunpack.c.l.b16 %v1124
          %v1145 = vunpack.c.l.b16 %v1125
          %v1146 = vunpack.c.l.b16 %v1126
          %v1147 = vpack.c.b16 %v1140, %v1139
          %v1148 = vpack.c.b16 %v1142, %v1141
          %v1149 = vpack.c.b16 %v1144, %v1143
          %v1150 = vpack.c.b16 %v1146, %v1145
          %v1155 = vunpack.c.l.b16 %v1127
          %v1156 = vunpack.c.l.b16 %v1128
          %v1157 = vunpack.c.l.b16 %v1129
          %v1158 = vunpack.c.l.b16 %v1130
          %v1159 = vpack.c.b16 %v1156, %v1155
          %v1160 = vpack.c.b16 %v1158, %v1157
          %v1164 = vsel %vm1065, %v1147, 0
          %v1167 = vsel %vm1065, %v1148, 0
          %v1170 = vsel %vm1065, %v1149, 0
          %v1173 = vsel %vm1065, %v1150, 0
          %1175 = vmatprep.subr.bf16.mxu0 0
          %1176 = vmatpush1.bf16.msra.mxu0 0
          %1177 = vmatprep.subr.bf16.mxu0 0
          %1178 = vmatpush1.bf16.msra.mxu0 0
          %1179 = vmatprep.subr.bf16.mxu0 0
          %1180 = vmatpush1.bf16.msra.mxu0 0
          %1181 = vmatprep.subr.bf16.mxu0 0
          %1182 = vmatpush1.bf16.msra.mxu0 0
          %1183 = vmatprep.subr.bf16.mxu0 0
          %1184 = vmatpush1.bf16.msra.mxu0 0
          %1185 = vmatprep.subr.bf16.mxu0 0
          %1186 = vmatpush1.bf16.msra.mxu0 0
          %1187 = vmatprep.subr.bf16.mxu0 0
          %1188 = vmatpush1.bf16.msra.mxu0 %v1160
          %1189 = vmatprep.subr.bf16.mxu0 0
          %1190 = vmatpush1.bf16.msra.mxu0 %v1159
          %1191 = vmatprep.subr.bf16.mxu0 0
          %1192 = vmatpush2.bf16.msra.mxu0 0
          %1193 = vmatprep.subr.bf16.mxu0 0
          %1194 = vmatpush2.bf16.msra.mxu0 0
          %1195 = vmatprep.subr.bf16.mxu0 0
          %1196 = vmatpush2.bf16.msra.mxu0 0
          %1197 = vmatprep.subr.bf16.mxu0 0
          %1198 = vmatpush2.bf16.msra.mxu0 0
          %1199 = vmatprep.subr.bf16.mxu0 0
          %1200 = vmatpush2.bf16.msra.mxu0 0
          %1201 = vmatprep.subr.bf16.mxu0 0
          %1202 = vmatpush2.bf16.msra.mxu0 0
          %1203 = vmatprep.subr.bf16.mxu0 0
          %1204 = vmatpush2.bf16.msra.mxu0 0
          %1205 = vmatprep.subr.bf16.mxu0 0
          %1206 = vmatpush2.bf16.msra.mxu0 0
          %1207 = vmatprep.mubr.bf16.mxu0 0
          %1208 = vmatmul.mubr.bf16.gmra.mxu0 %v1164
          %v1209 = vpop.f32.mrf.mxu0
          %v1210 = vadd.f32 0.0, %v1209
          %v1211 = vpop.f32.mrf.mxu0
          %v1212 = vpop.f32.mrf.mxu0
          %v1213 = vadd.f32 0.0, %v1212
          %v1214 = vpop.f32.mrf.mxu0
          %1215 = vmatprep.mubr.bf16.mxu0 0
          %1216 = vmatmul.mubr.bf16.gmra.mxu0 %v1167
          %v1217 = vpop.f32.mrf.mxu0
          %v1218 = vadd.f32 0.0, %v1217
          %v1219 = vpop.f32.mrf.mxu0
          %v1220 = vpop.f32.mrf.mxu0
          %v1221 = vadd.f32 0.0, %v1220
          %v1222 = vpop.f32.mrf.mxu0
          %1223 = vmatprep.mubr.bf16.mxu0 0
          %1224 = vmatmul.mubr.bf16.gmra.mxu0 %v1170
          %v1225 = vpop.f32.mrf.mxu0
          %v1226 = vadd.f32 0.0, %v1225
          %v1227 = vpop.f32.mrf.mxu0
          %v1228 = vpop.f32.mrf.mxu0
          %v1229 = vadd.f32 0.0, %v1228
          %v1230 = vpop.f32.mrf.mxu0
          %1231 = vmatprep.mubr.bf16.mxu0 0
          %1232 = vmatmul.mubr.bf16.gmra.mxu0 %v1173
          %v1233 = vpop.f32.mrf.mxu0
          %v1234 = vadd.f32 0.0, %v1233
          %v1235 = vpop.f32.mrf.mxu0
          %v1236 = vpop.f32.mrf.mxu0
          %v1237 = vadd.f32 0.0, %v1236
          %v1238 = vpop.f32.mrf.mxu0
          %1239 = vdwg.mxu0
          %v1240 = vld [vmem:[%s954] sm:$0x7]
          %v1242 = vrot.slane %v1240, 7
          %v1244 = vsub.f32 %v1240, %v1242
          %v1245 = vrot.slane %v1240, 6
          %v1247 = vsub.f32 %v1240, %v1245
          %v1248 = vld [vmem:[%s771] sm:$0xff]
          %vm1249 = vcmp.eq.s32.totalorder %v1248, 1
          %v1250 = vsel %vm1249, 1, 0
          %v1251 = vcvt.s32.f32 %v1250
          %v1252 = vlaneseq
          %v1253 = vshrl.u32 %v1252, 7
          %v1254 = vsub.s32 0, %v1253
          %v1255 = vrot.slane %v1251, %v1254
          %1257 = vbcast.lane.b32.xlu0 %v1255, 256
          %v1258 = vpop.permute.xlu0 %1257
          %v1259 = vlaneseq
          %v1260 = vshrl.u32 %v1259, 7
          %v1261 = vsub.s32 1, %v1260
          %v1262 = vrot.slane %v1251, %v1261
          %1264 = vbcast.lane.b32.xlu0 %v1262, 256
          %v1265 = vpop.permute.xlu0 %1264
          %v1266 = vlaneseq
          %v1267 = vshrl.u32 %v1266, 7
          %v1268 = vsub.s32 2, %v1267
          %v1269 = vrot.slane %v1251, %v1268
          %1271 = vbcast.lane.b32.xlu0 %v1269, 256
          %v1272 = vpop.permute.xlu0 %1271
          %v1273 = vlaneseq
          %v1274 = vshrl.u32 %v1273, 7
          %v1275 = vsub.s32 3, %v1274
          %v1276 = vrot.slane %v1251, %v1275
          %1278 = vbcast.lane.b32.xlu0 %v1276, 256
          %v1279 = vpop.permute.xlu0 %1278
          %v1280 = vlaneseq
          %v1281 = vshrl.u32 %v1280, 7
          %v1282 = vsub.s32 4, %v1281
          %v1283 = vrot.slane %v1251, %v1282
          %1285 = vbcast.lane.b32.xlu0 %v1283, 256
          %v1286 = vpop.permute.xlu0 %1285
          %v1287 = vlaneseq
          %v1288 = vshrl.u32 %v1287, 7
          %v1289 = vsub.s32 5, %v1288
          %v1290 = vrot.slane %v1251, %v1289
          %1292 = vbcast.lane.b32.xlu0 %v1290, 256
          %v1293 = vpop.permute.xlu0 %1292
          %v1294 = vlaneseq
          %v1295 = vshrl.u32 %v1294, 7
          %v1296 = vsub.s32 6, %v1295
          %v1297 = vrot.slane %v1251, %v1296
          %1299 = vbcast.lane.b32.xlu0 %v1297, 256
          %v1300 = vpop.permute.xlu0 %1299
          %v1301 = vlaneseq
          %v1302 = vshrl.u32 %v1301, 7
          %v1303 = vsub.s32 7, %v1302
          %v1304 = vrot.slane %v1251, %v1303
          %1306 = vbcast.lane.b32.xlu0 %v1304, 256
          %v1307 = vpop.permute.xlu0 %1306
          %vm1308 = vcmp.eq.s32.totalorder %v1248, 2
          %v1309 = vsel %vm1308, 1, 0
          %v1310 = vcvt.s32.f32 %v1309
          %v1311 = vlaneseq
          %v1312 = vshrl.u32 %v1311, 7
          %v1313 = vsub.s32 0, %v1312
          %v1314 = vrot.slane %v1310, %v1313
          %1316 = vbcast.lane.b32.xlu0 %v1314, 256
          %v1317 = vpop.permute.xlu0 %1316
          %v1318 = vlaneseq
          %v1319 = vshrl.u32 %v1318, 7
          %v1320 = vsub.s32 1, %v1319
          %v1321 = vrot.slane %v1310, %v1320
          %1323 = vbcast.lane.b32.xlu0 %v1321, 256
          %v1324 = vpop.permute.xlu0 %1323
          %v1325 = vlaneseq
          %v1326 = vshrl.u32 %v1325, 7
          %v1327 = vsub.s32 2, %v1326
          %v1328 = vrot.slane %v1310, %v1327
          %1330 = vbcast.lane.b32.xlu0 %v1328, 256
          %v1331 = vpop.permute.xlu0 %1330
          %v1332 = vlaneseq
          %v1333 = vshrl.u32 %v1332, 7
          %v1334 = vsub.s32 3, %v1333
          %v1335 = vrot.slane %v1310, %v1334
          %1337 = vbcast.lane.b32.xlu0 %v1335, 256
          %v1338 = vpop.permute.xlu0 %1337
          %v1339 = vlaneseq
          %v1340 = vshrl.u32 %v1339, 7
          %v1341 = vsub.s32 4, %v1340
          %v1342 = vrot.slane %v1310, %v1341
          %1344 = vbcast.lane.b32.xlu0 %v1342, 256
          %v1345 = vpop.permute.xlu0 %1344
          %v1346 = vlaneseq
          %v1347 = vshrl.u32 %v1346, 7
          %v1348 = vsub.s32 5, %v1347
          %v1349 = vrot.slane %v1310, %v1348
          %1351 = vbcast.lane.b32.xlu0 %v1349, 256
          %v1352 = vpop.permute.xlu0 %1351
          %v1353 = vlaneseq
          %v1354 = vshrl.u32 %v1353, 7
          %v1355 = vsub.s32 6, %v1354
          %v1356 = vrot.slane %v1310, %v1355
          %1358 = vbcast.lane.b32.xlu0 %v1356, 256
          %v1359 = vpop.permute.xlu0 %1358
          %v1360 = vlaneseq
          %v1361 = vshrl.u32 %v1360, 7
          %v1362 = vsub.s32 7, %v1361
          %v1363 = vrot.slane %v1310, %v1362
          %1365 = vbcast.lane.b32.xlu0 %v1363, 256
          %v1366 = vpop.permute.xlu0 %1365
          %v1367 = vlaneseq
          %v1368 = vshrl.u32 %v1367, 7
          %v1369 = vsub.s32 0, %v1368
          %v1370 = vrot.slane %v1240, %v1369
          %v1371 = vadd.f32 %v1210, %v1370
          %v1372 = vadd.f32 %v1213, %v1370
          %v1373 = vadd.f32 %v1218, %v1370
          %v1374 = vadd.f32 %v1221, %v1370
          %v1375 = vadd.f32 %v1226, %v1370
          %v1376 = vadd.f32 %v1229, %v1370
          %v1377 = vadd.f32 %v1234, %v1370
          %v1378 = vadd.f32 %v1237, %v1370
          %v1379 = vlaneseq
          %v1380 = vshrl.u32 %v1379, 7
          %v1381 = vsub.s32 1, %v1380
          %v1382 = vrot.slane %v1244, %v1381
          %v1383 = vmul.f32 %v1258, %v1382
          %v1384 = vmul.f32 %v1265, %v1382
          %v1385 = vmul.f32 %v1272, %v1382
          %v1386 = vmul.f32 %v1279, %v1382
          %v1387 = vmul.f32 %v1286, %v1382
          %v1388 = vmul.f32 %v1293, %v1382
          %v1389 = vmul.f32 %v1300, %v1382
          %v1390 = vmul.f32 %v1307, %v1382
          %v1391 = vadd.f32 %v1371, %v1383
          %v1392 = vadd.f32 %v1372, %v1384
          %v1393 = vadd.f32 %v1373, %v1385
          %v1394 = vadd.f32 %v1374, %v1386
          %v1395 = vadd.f32 %v1375, %v1387
          %v1396 = vadd.f32 %v1376, %v1388
          %v1397 = vadd.f32 %v1377, %v1389
          %v1398 = vadd.f32 %v1378, %v1390
          %v1399 = vlaneseq
          %v1400 = vshrl.u32 %v1399, 7
          %v1401 = vsub.s32 2, %v1400
          %v1402 = vrot.slane %v1247, %v1401
          %v1403 = vmul.f32 %v1317, %v1402
          %v1404 = vmul.f32 %v1324, %v1402
          %v1405 = vmul.f32 %v1331, %v1402
          %v1406 = vmul.f32 %v1338, %v1402
          %v1407 = vmul.f32 %v1345, %v1402
          %v1408 = vmul.f32 %v1352, %v1402
          %v1409 = vmul.f32 %v1359, %v1402
          %v1410 = vmul.f32 %v1366, %v1402
          %v1411 = vadd.f32 %v1391, %v1403
          %v1412 = vadd.f32 %v1392, %v1404
          %v1413 = vadd.f32 %v1393, %v1405
          %v1414 = vadd.f32 %v1394, %v1406
          %v1415 = vadd.f32 %v1395, %v1407
          %v1416 = vadd.f32 %v1396, %v1408
          %v1417 = vadd.f32 %v1397, %v1409
          %v1418 = vadd.f32 %v1398, %v1410
          %v1420 = vcombine.high %v1114, %v1114
          %v1422 = vunpack.c.l.s4 1966171168
          %v1423 = vunpack.c.0.s8 %v1422
          %v1424 = vlaneseq
          %v1425 = vshrl.u32 %v1424, 7
          %v1426 = vsub.s32 %v1423, %v1425
          %v1427 = vrot.slane %v1114, %v1426
          %v1429 = vunpack.c.l.s4 1966171168
          %v1430 = vunpack.c.0.s8 %v1429
          %v1431 = vlaneseq
          %v1432 = vshrl.u32 %v1431, 7
          %v1433 = vsub.s32 %v1430, %v1432
          %v1434 = vrot.slane %v1420, %v1433
          %v1435 = vcombine.high %v1427, %v1427
          %v1436 = vcombine.high %v1434, %v1434
          %v1438 = vunpack.c.l.s4 1966171168
          %v1439 = vunpack.c.0.s8 %v1438
          %v1440 = vlaneseq
          %v1441 = vshrl.u32 %v1440, 7
          %v1442 = vsub.s32 %v1439, %v1441
          %v1443 = vrot.slane %v1427, %v1442
          %v1445 = vunpack.c.l.s4 1966171168
          %v1446 = vunpack.c.0.s8 %v1445
          %v1447 = vlaneseq
          %v1448 = vshrl.u32 %v1447, 7
          %v1449 = vsub.s32 %v1446, %v1448
          %v1450 = vrot.slane %v1434, %v1449
          %v1452 = vunpack.c.l.s4 1966171168
          %v1453 = vunpack.c.0.s8 %v1452
          %v1454 = vlaneseq
          %v1455 = vshrl.u32 %v1454, 7
          %v1456 = vsub.s32 %v1453, %v1455
          %v1457 = vrot.slane %v1435, %v1456
          %v1459 = vunpack.c.l.s4 1966171168
          %v1460 = vunpack.c.0.s8 %v1459
          %v1461 = vlaneseq
          %v1462 = vshrl.u32 %v1461, 7
          %v1463 = vsub.s32 %v1460, %v1462
          %v1464 = vrot.slane %v1436, %v1463
          %v1465 = vcombine.high %v1443, %v1443
          %v1466 = vcombine.high %v1450, %v1450
          %v1467 = vcombine.high %v1457, %v1457
          %v1468 = vcombine.high %v1464, %v1464
          %v1469 = vlaneseq
          %v1470 = vshrl.u32 %v1469, 7
          %v1471 = vsub.s32 0, %v1470
          %v1472 = vrot.slane %v1443, %v1471
          %v1473 = vlaneseq
          %v1474 = vshrl.u32 %v1473, 7
          %v1475 = vsub.s32 0, %v1474
          %v1476 = vrot.slane %v1457, %v1475
          %v1477 = vlaneseq
          %v1478 = vshrl.u32 %v1477, 7
          %v1479 = vsub.s32 0, %v1478
          %v1480 = vrot.slane %v1465, %v1479
          %v1481 = vlaneseq
          %v1482 = vshrl.u32 %v1481, 7
          %v1483 = vsub.s32 0, %v1482
          %v1484 = vrot.slane %v1467, %v1483
          %v1485 = vlaneseq
          %v1486 = vshrl.u32 %v1485, 7
          %v1487 = vsub.s32 0, %v1486
          %v1488 = vrot.slane %v1450, %v1487
          %v1489 = vlaneseq
          %v1490 = vshrl.u32 %v1489, 7
          %v1491 = vsub.s32 0, %v1490
          %v1492 = vrot.slane %v1464, %v1491
          %v1493 = vlaneseq
          %v1494 = vshrl.u32 %v1493, 7
          %v1495 = vsub.s32 0, %v1494
          %v1496 = vrot.slane %v1466, %v1495
          %v1497 = vlaneseq
          %v1498 = vshrl.u32 %v1497, 7
          %v1499 = vsub.s32 0, %v1498
          %v1500 = vrot.slane %v1468, %v1499
          %v1509 = vadd.f32 %v1411, %v1472
          %v1510 = vadd.f32 %v1412, %v1476
          %v1511 = vadd.f32 %v1413, %v1480
          %v1512 = vadd.f32 %v1414, %v1484
          %v1513 = vadd.f32 %v1415, %v1488
          %v1514 = vadd.f32 %v1416, %v1492
          %v1515 = vadd.f32 %v1417, %v1496
          %v1516 = vadd.f32 %v1418, %v1500
          %1517 = vrot.lane.b32.xlu0 %v1114, 64
          %v1518 = vpop.permute.xlu0 %1517
          %v1520 = vadd.f32 %v1509, %v1518
          %v1521 = vadd.f32 %v1510, %v1518
          %v1522 = vadd.f32 %v1511, %v1518
          %v1523 = vadd.f32 %v1512, %v1518
          %v1524 = vadd.f32 %v1513, %v1518
          %v1525 = vadd.f32 %v1514, %v1518
          %v1526 = vadd.f32 %v1515, %v1518
          %v1527 = vadd.f32 %v1516, %v1518
          %v1528 = vmax.f32 %v1520, 0.0
          %v1529 = vmax.f32 %v1521, 0.0
          %v1530 = vmax.f32 %v1522, 0.0
          %v1531 = vmax.f32 %v1523, 0.0
          %v1532 = vmax.f32 %v1524, 0.0
          %v1533 = vmax.f32 %v1525, 0.0
          %v1534 = vmax.f32 %v1526, 0.0
          %v1535 = vmax.f32 %v1527, 0.0
          %v1536 = vpack.c.bf16 %v1529, %v1528
          %v1537 = vpack.c.bf16 %v1531, %v1530
          %v1538 = vpack.c.bf16 %v1533, %v1532
          %v1539 = vpack.c.bf16 %v1535, %v1534
          %v1540 = vld [vmem:[%s964] sm:$0xf]
          %v1541 = vld [vmem:[%s964 + $0x4] sm:$0xf]
          %v1542 = vld [vmem:[%s964 + $0x8] sm:$0xf]
          %v1543 = vld [vmem:[%s964 + $0xc] sm:$0xf]
          %v1544 = vld [vmem:[%s964 + $0x10] sm:$0xf]
          %v1545 = vld [vmem:[%s964 + $0x14] sm:$0xf]
          %v1546 = vld [vmem:[%s964 + $0x18] sm:$0xf]
          %v1547 = vld [vmem:[%s964 + $0x1c] sm:$0xf]
          %v1548 = vld [vmem:[%s805] sm:$0x1]
          %v1550 = vlaneseq
          %v1551 = vshrl.u32 %v1550, 7
          %v1552 = vsub.s32 0, %v1551
          %v1553 = vrot.slane %v1548, %v1552
          %v1563 = vunpack.c.l.b16 %v1540
          %v1564 = vunpack.c.l.b16 %v1541
          %v1565 = vunpack.c.l.b16 %v1542
          %v1566 = vunpack.c.l.b16 %v1543
          %v1567 = vunpack.c.l.b16 %v1544
          %v1568 = vunpack.c.l.b16 %v1545
          %v1569 = vunpack.c.l.b16 %v1546
          %v1570 = vunpack.c.l.b16 %v1547
          %v1571 = vpack.c.b16 %v1564, %v1563
          %v1572 = vpack.c.b16 %v1566, %v1565
          %v1573 = vpack.c.b16 %v1568, %v1567
          %v1574 = vpack.c.b16 %v1570, %v1569
          %vm1579 = vcmask 523264
          %v1581 = vsel %vm1579, %v1536, 0
          %v1584 = vsel %vm1579, %v1537, 0
          %v1587 = vsel %vm1579, %v1538, 0
          %v1590 = vsel %vm1579, %v1539, 0
          %1592 = vmatprep.subr.bf16.mxu0 0
          %1593 = vmatpush1.bf16.msra.mxu0 0
          %1594 = vmatprep.subr.bf16.mxu0 0
          %1595 = vmatpush1.bf16.msra.mxu0 0
          %1596 = vmatprep.subr.bf16.mxu0 0
          %1597 = vmatpush1.bf16.msra.mxu0 0
          %1598 = vmatprep.subr.bf16.mxu0 0
          %1599 = vmatpush1.bf16.msra.mxu0 0
          %1600 = vmatprep.subr.bf16.mxu0 0
          %1601 = vmatpush1.bf16.msra.mxu0 %v1574
          %1602 = vmatprep.subr.bf16.mxu0 0
          %1603 = vmatpush1.bf16.msra.mxu0 %v1573
          %1604 = vmatprep.subr.bf16.mxu0 0
          %1605 = vmatpush1.bf16.msra.mxu0 %v1572
          %1606 = vmatprep.subr.bf16.mxu0 0
          %1607 = vmatpush1.bf16.msra.mxu0 %v1571
          %1608 = vmatprep.subr.bf16.mxu0 0
          %1609 = vmatpush2.bf16.msra.mxu0 0
          %1610 = vmatprep.subr.bf16.mxu0 0
          %1611 = vmatpush2.bf16.msra.mxu0 0
          %1612 = vmatprep.subr.bf16.mxu0 0
          %1613 = vmatpush2.bf16.msra.mxu0 0
          %1614 = vmatprep.subr.bf16.mxu0 0
          %1615 = vmatpush2.bf16.msra.mxu0 0
          %1616 = vmatprep.subr.bf16.mxu0 0
          %1617 = vmatpush2.bf16.msra.mxu0 0
          %1618 = vmatprep.subr.bf16.mxu0 0
          %1619 = vmatpush2.bf16.msra.mxu0 0
          %1620 = vmatprep.subr.bf16.mxu0 0
          %1621 = vmatpush2.bf16.msra.mxu0 0
          %1622 = vmatprep.subr.bf16.mxu0 0
          %1623 = vmatpush2.bf16.msra.mxu0 0
          %1624 = vmatprep.mubr.bf16.mxu0 0
          %1625 = vmatmul.mubr.bf16.gmra.mxu0 %v1581
          %v1626 = vpop.f32.mrf.mxu0
          %v1627 = vadd.f32 %v1553, %v1626
          %v1628 = vpop.f32.mrf.mxu0
          %v1629 = vpop.f32.mrf.mxu0
          %v1630 = vadd.f32 %v1553, %v1629
          %v1631 = vpop.f32.mrf.mxu0
          %1632 = vmatprep.mubr.bf16.mxu0 0
          %1633 = vmatmul.mubr.bf16.gmra.mxu0 %v1584
          %v1634 = vpop.f32.mrf.mxu0
          %v1635 = vadd.f32 %v1553, %v1634
          %v1636 = vpop.f32.mrf.mxu0
          %v1637 = vpop.f32.mrf.mxu0
          %v1638 = vadd.f32 %v1553, %v1637
          %v1639 = vpop.f32.mrf.mxu0
          %1640 = vmatprep.mubr.bf16.mxu0 0
          %1641 = vmatmul.mubr.bf16.gmra.mxu0 %v1587
          %v1642 = vpop.f32.mrf.mxu0
          %v1643 = vadd.f32 %v1553, %v1642
          %v1644 = vpop.f32.mrf.mxu0
          %v1645 = vpop.f32.mrf.mxu0
          %v1646 = vadd.f32 %v1553, %v1645
          %v1647 = vpop.f32.mrf.mxu0
          %1648 = vmatprep.mubr.bf16.mxu0 0
          %1649 = vmatmul.mubr.bf16.gmra.mxu0 %v1590
          %v1650 = vpop.f32.mrf.mxu0
          %v1651 = vadd.f32 %v1553, %v1650
          %v1652 = vpop.f32.mrf.mxu0
          %v1653 = vpop.f32.mrf.mxu0
          %v1654 = vadd.f32 %v1553, %v1653
          %v1655 = vpop.f32.mrf.mxu0
          %1656 = vdwg.mxu0
          %1657 = vst.msk [vmem:[#allocation4] sm:$0xff] %vm1065, %v1627
          %1658 = vst.msk [vmem:[#allocation4 + $0x8] sm:$0xff] %vm1065, %v1630
          %1659 = vst.msk [vmem:[#allocation4 + $0x10] sm:$0xff] %vm1065, %v1635
          %1660 = vst.msk [vmem:[#allocation4 + $0x18] sm:$0xff] %vm1065, %v1638
          %1661 = vst.msk [vmem:[#allocation4 + $0x20] sm:$0xff] %vm1065, %v1643
          %1662 = vst.msk [vmem:[#allocation4 + $0x28] sm:$0xff] %vm1065, %v1646
          %1663 = vst.msk [vmem:[#allocation4 + $0x30] sm:$0xff] %vm1065, %v1651
          %1664 = vst.msk [vmem:[#allocation4 + $0x38] sm:$0xff] %vm1065, %v1654
        $region116: #{tpu_custom_call.1} parent=87 // pred_fallthru
          _
        %v1665 = vld [vmem:[%s990] sm:$0x7]
        %v1666 = vld [vmem:[#allocation3] sm:$0xff]
        %v1667 = vpack.c.bf16 %v1666, %v1666
        %v1668 = vld [vmem:[%s982] sm:$0xf]
        %v1669 = vld [vmem:[%s982 + $0x4] sm:$0xf]
        %v1670 = vld [vmem:[%s982 + $0x8] sm:$0xf]
        %v1671 = vld [vmem:[%s982 + $0xc] sm:$0xf]
        %v1676 = vunpack.c.l.b16 %v1668
        %v1677 = vunpack.c.l.b16 %v1669
        %v1678 = vunpack.c.l.b16 %v1670
        %v1679 = vunpack.c.l.b16 %v1671
        %v1680 = vpack.c.b16 %v1677, %v1676
        %v1681 = vpack.c.b16 %v1679, %v1678
        %vm1684 = vcmask 261120
        %v1686 = vsel %vm1684, %v1667, 0
        %1688 = vmatprep.subr.bf16.mxu0 0
        %1689 = vmatpush1.bf16.msra.mxu0 0
        %1690 = vmatprep.subr.bf16.mxu0 0
        %1691 = vmatpush1.bf16.msra.mxu0 0
        %1692 = vmatprep.subr.bf16.mxu0 0
        %1693 = vmatpush1.bf16.msra.mxu0 0
        %1694 = vmatprep.subr.bf16.mxu0 0
        %1695 = vmatpush1.bf16.msra.mxu0 0
        %1696 = vmatprep.subr.bf16.mxu0 0
        %1697 = vmatpush1.bf16.msra.mxu0 0
        %1698 = vmatprep.subr.bf16.mxu0 0
        %1699 = vmatpush1.bf16.msra.mxu0 0
        %1700 = vmatprep.subr.bf16.mxu0 0
        %1701 = vmatpush1.bf16.msra.mxu0 %v1681
        %1702 = vmatprep.subr.bf16.mxu0 0
        %1703 = vmatpush1.bf16.msra.mxu0 %v1680
        %1704 = vmatprep.subr.bf16.mxu0 0
        %1705 = vmatpush2.bf16.msra.mxu0 0
        %1706 = vmatprep.subr.bf16.mxu0 0
        %1707 = vmatpush2.bf16.msra.mxu0 0
        %1708 = vmatprep.subr.bf16.mxu0 0
        %1709 = vmatpush2.bf16.msra.mxu0 0
        %1710 = vmatprep.subr.bf16.mxu0 0
        %1711 = vmatpush2.bf16.msra.mxu0 0
        %1712 = vmatprep.subr.bf16.mxu0 0
        %1713 = vmatpush2.bf16.msra.mxu0 0
        %1714 = vmatprep.subr.bf16.mxu0 0
        %1715 = vmatpush2.bf16.msra.mxu0 0
        %1716 = vmatprep.subr.bf16.mxu0 0
        %1717 = vmatpush2.bf16.msra.mxu0 0
        %1718 = vmatprep.subr.bf16.mxu0 0
        %1719 = vmatpush2.bf16.msra.mxu0 0
        %1720 = vmatprep.mubr.bf16.mxu0 0
        %1721 = vmatmul.mubr.bf16.gmra.mxu0 %v1686
        %v1722 = vpop.f32.mrf.mxu0
        %v1723 = vadd.f32 0.0, %v1722
        %v1724 = vpop.f32.mrf.mxu0
        %v1725 = vpop.f32.mrf.mxu0
        %v1726 = vpop.f32.mrf.mxu0
        %1727 = vdwg.mxu0
        %v1728 = vlaneseq
        %v1729 = vshrl.u32 %v1728, 7
        %v1730 = vsub.s32 2, %v1729
        %v1731 = vrot.slane %v1665, %v1730
        %1733 = vrot.lane.b32.xlu0 %v1731, 96
        %v1734 = vpop.permute.xlu0 %1733
        %v1736 = vadd.f32 %v1723, %v1734
        %v1737 = vld [vmem:[#allocation4] sm:$0xff]
        %v1738 = vld [vmem:[#allocation4 + $0x8] sm:$0xff]
        %v1739 = vld [vmem:[#allocation4 + $0x10] sm:$0xff]
        %v1740 = vld [vmem:[#allocation4 + $0x18] sm:$0xff]
        %v1741 = vld [vmem:[#allocation4 + $0x20] sm:$0xff]
        %v1742 = vld [vmem:[#allocation4 + $0x28] sm:$0xff]
        %v1743 = vld [vmem:[#allocation4 + $0x30] sm:$0xff]
        %v1744 = vld [vmem:[#allocation4 + $0x38] sm:$0xff]
        %v1745 = vpack.c.bf16 %v1738, %v1737
        %v1746 = vpack.c.bf16 %v1740, %v1739
        %v1747 = vpack.c.bf16 %v1742, %v1741
        %v1748 = vpack.c.bf16 %v1744, %v1743
        %v1749 = vld [vmem:[%s973] sm:$0xf]
        %v1750 = vld [vmem:[%s973 + $0x4] sm:$0xf]
        %v1751 = vld [vmem:[%s973 + $0x8] sm:$0xf]
        %v1752 = vld [vmem:[%s973 + $0xc] sm:$0xf]
        %v1754 = vcombine.high %v1723, %v1723
        %v1756 = vunpack.c.l.s4 1966171168
        %v1757 = vunpack.c.0.s8 %v1756
        %v1758 = vlaneseq
        %v1759 = vshrl.u32 %v1758, 7
        %v1760 = vsub.s32 %v1757, %v1759
        %v1761 = vrot.slane %v1723, %v1760
        %v1763 = vunpack.c.l.s4 1966171168
        %v1764 = vunpack.c.0.s8 %v1763
        %v1765 = vlaneseq
        %v1766 = vshrl.u32 %v1765, 7
        %v1767 = vsub.s32 %v1764, %v1766
        %v1768 = vrot.slane %v1754, %v1767
        %v1769 = vcombine.high %v1761, %v1761
        %v1770 = vcombine.high %v1768, %v1768
        %v1772 = vunpack.c.l.s4 1966171168
        %v1773 = vunpack.c.0.s8 %v1772
        %v1774 = vlaneseq
        %v1775 = vshrl.u32 %v1774, 7
        %v1776 = vsub.s32 %v1773, %v1775
        %v1777 = vrot.slane %v1761, %v1776
        %v1779 = vunpack.c.l.s4 1966171168
        %v1780 = vunpack.c.0.s8 %v1779
        %v1781 = vlaneseq
        %v1782 = vshrl.u32 %v1781, 7
        %v1783 = vsub.s32 %v1780, %v1782
        %v1784 = vrot.slane %v1768, %v1783
        %v1786 = vunpack.c.l.s4 1966171168
        %v1787 = vunpack.c.0.s8 %v1786
        %v1788 = vlaneseq
        %v1789 = vshrl.u32 %v1788, 7
        %v1790 = vsub.s32 %v1787, %v1789
        %v1791 = vrot.slane %v1769, %v1790
        %v1793 = vunpack.c.l.s4 1966171168
        %v1794 = vunpack.c.0.s8 %v1793
        %v1795 = vlaneseq
        %v1796 = vshrl.u32 %v1795, 7
        %v1797 = vsub.s32 %v1794, %v1796
        %v1798 = vrot.slane %v1770, %v1797
        %v1799 = vcombine.high %v1777, %v1777
        %v1800 = vcombine.high %v1784, %v1784
        %v1801 = vcombine.high %v1791, %v1791
        %v1802 = vcombine.high %v1798, %v1798
        %v1803 = vlaneseq
        %v1804 = vshrl.u32 %v1803, 7
        %v1805 = vsub.s32 0, %v1804
        %v1806 = vrot.slane %v1777, %v1805
        %v1807 = vlaneseq
        %v1808 = vshrl.u32 %v1807, 7
        %v1809 = vsub.s32 0, %v1808
        %v1810 = vrot.slane %v1791, %v1809
        %v1811 = vlaneseq
        %v1812 = vshrl.u32 %v1811, 7
        %v1813 = vsub.s32 0, %v1812
        %v1814 = vrot.slane %v1799, %v1813
        %v1815 = vlaneseq
        %v1816 = vshrl.u32 %v1815, 7
        %v1817 = vsub.s32 0, %v1816
        %v1818 = vrot.slane %v1801, %v1817
        %v1819 = vlaneseq
        %v1820 = vshrl.u32 %v1819, 7
        %v1821 = vsub.s32 0, %v1820
        %v1822 = vrot.slane %v1784, %v1821
        %v1823 = vlaneseq
        %v1824 = vshrl.u32 %v1823, 7
        %v1825 = vsub.s32 0, %v1824
        %v1826 = vrot.slane %v1798, %v1825
        %v1827 = vlaneseq
        %v1828 = vshrl.u32 %v1827, 7
        %v1829 = vsub.s32 0, %v1828
        %v1830 = vrot.slane %v1800, %v1829
        %v1831 = vlaneseq
        %v1832 = vshrl.u32 %v1831, 7
        %v1833 = vsub.s32 0, %v1832
        %v1834 = vrot.slane %v1802, %v1833
        %1843 = vrot.lane.b32.xlu0 %v1723, 96
        %v1844 = vpop.permute.xlu0 %1843
        %v1846 = vadd.f32 %v1806, %v1844
        %v1847 = vadd.f32 %v1810, %v1844
        %v1848 = vadd.f32 %v1814, %v1844
        %v1849 = vadd.f32 %v1818, %v1844
        %v1850 = vadd.f32 %v1822, %v1844
        %v1851 = vadd.f32 %v1826, %v1844
        %v1852 = vadd.f32 %v1830, %v1844
        %v1853 = vadd.f32 %v1834, %v1844
        %v1854 = vlaneseq
        %v1855 = vshrl.u32 %v1854, 7
        %v1856 = vsub.s32 0, %v1855
        %v1857 = vrot.slane %v1665, %v1856
        %v1858 = vadd.f32 %v1846, %v1857
        %v1859 = vadd.f32 %v1847, %v1857
        %v1860 = vadd.f32 %v1848, %v1857
        %v1861 = vadd.f32 %v1849, %v1857
        %v1862 = vadd.f32 %v1850, %v1857
        %v1863 = vadd.f32 %v1851, %v1857
        %v1864 = vadd.f32 %v1852, %v1857
        %v1865 = vadd.f32 %v1853, %v1857
        %v1870 = vunpack.c.l.b16 %v1749
        %v1871 = vunpack.c.l.b16 %v1750
        %v1872 = vunpack.c.l.b16 %v1751
        %v1873 = vunpack.c.l.b16 %v1752
        %v1874 = vpack.c.b16 %v1871, %v1870
        %v1875 = vpack.c.b16 %v1873, %v1872
        %v1879 = vsel %vm1684, %v1745, 0
        %v1882 = vsel %vm1684, %v1746, 0
        %v1885 = vsel %vm1684, %v1747, 0
        %v1888 = vsel %vm1684, %v1748, 0
        %1890 = vmatprep.subr.bf16.mxu0 0
        %1891 = vmatpush1.bf16.msra.mxu0 0
        %1892 = vmatprep.subr.bf16.mxu0 0
        %1893 = vmatpush1.bf16.msra.mxu0 0
        %1894 = vmatprep.subr.bf16.mxu0 0
        %1895 = vmatpush1.bf16.msra.mxu0 0
        %1896 = vmatprep.subr.bf16.mxu0 0
        %1897 = vmatpush1.bf16.msra.mxu0 0
        %1898 = vmatprep.subr.bf16.mxu0 0
        %1899 = vmatpush1.bf16.msra.mxu0 0
        %1900 = vmatprep.subr.bf16.mxu0 0
        %1901 = vmatpush1.bf16.msra.mxu0 0
        %1902 = vmatprep.subr.bf16.mxu0 0
        %1903 = vmatpush1.bf16.msra.mxu0 %v1875
        %1904 = vmatprep.subr.bf16.mxu0 0
        %1905 = vmatpush1.bf16.msra.mxu0 %v1874
        %1906 = vmatprep.subr.bf16.mxu0 0
        %1907 = vmatpush2.bf16.msra.mxu0 0
        %1908 = vmatprep.subr.bf16.mxu0 0
        %1909 = vmatpush2.bf16.msra.mxu0 0
        %1910 = vmatprep.subr.bf16.mxu0 0
        %1911 = vmatpush2.bf16.msra.mxu0 0
        %1912 = vmatprep.subr.bf16.mxu0 0
        %1913 = vmatpush2.bf16.msra.mxu0 0
        %1914 = vmatprep.subr.bf16.mxu0 0
        %1915 = vmatpush2.bf16.msra.mxu0 0
        %1916 = vmatprep.subr.bf16.mxu0 0
        %1917 = vmatpush2.bf16.msra.mxu0 0
        %1918 = vmatprep.subr.bf16.mxu0 0
        %1919 = vmatpush2.bf16.msra.mxu0 0
        %1920 = vmatprep.subr.bf16.mxu0 0
        %1921 = vmatpush2.bf16.msra.mxu0 0
        %1922 = vmatprep.mubr.bf16.mxu0 0
        %1923 = vmatmul.mubr.bf16.gmra.mxu0 %v1879
        %v1924 = vpop.f32.mrf.mxu0
        %v1925 = vadd.f32 %v1858, %v1924
        %v1926 = vpop.f32.mrf.mxu0
        %v1927 = vpop.f32.mrf.mxu0
        %v1928 = vadd.f32 %v1859, %v1927
        %v1929 = vpop.f32.mrf.mxu0
        %1930 = vmatprep.mubr.bf16.mxu0 0
        %1931 = vmatmul.mubr.bf16.gmra.mxu0 %v1882
        %v1932 = vpop.f32.mrf.mxu0
        %v1933 = vadd.f32 %v1860, %v1932
        %v1934 = vpop.f32.mrf.mxu0
        %v1935 = vpop.f32.mrf.mxu0
        %v1936 = vadd.f32 %v1861, %v1935
        %v1937 = vpop.f32.mrf.mxu0
        %1938 = vmatprep.mubr.bf16.mxu0 0
        %1939 = vmatmul.mubr.bf16.gmra.mxu0 %v1885
        %v1940 = vpop.f32.mrf.mxu0
        %v1941 = vadd.f32 %v1862, %v1940
        %v1942 = vpop.f32.mrf.mxu0
        %v1943 = vpop.f32.mrf.mxu0
        %v1944 = vadd.f32 %v1863, %v1943
        %v1945 = vpop.f32.mrf.mxu0
        %1946 = vmatprep.mubr.bf16.mxu0 0
        %1947 = vmatmul.mubr.bf16.gmra.mxu0 %v1888
        %v1948 = vpop.f32.mrf.mxu0
        %v1949 = vadd.f32 %v1864, %v1948
        %v1950 = vpop.f32.mrf.mxu0
        %v1951 = vpop.f32.mrf.mxu0
        %v1952 = vadd.f32 %v1865, %v1951
        %v1953 = vpop.f32.mrf.mxu0
        %1954 = vdwg.mxu0
        %v1955 = vmax.f32 %v1925, 0.0
        %v1956 = vmax.f32 %v1928, 0.0
        %v1957 = vmax.f32 %v1933, 0.0
        %v1958 = vmax.f32 %v1936, 0.0
        %v1959 = vmax.f32 %v1941, 0.0
        %v1960 = vmax.f32 %v1944, 0.0
        %v1961 = vmax.f32 %v1949, 0.0
        %v1962 = vmax.f32 %v1952, 0.0
        %v1963 = vadd.f32 %v1737, %v1955
        %v1964 = vadd.f32 %v1738, %v1956
        %v1965 = vadd.f32 %v1739, %v1957
        %v1966 = vadd.f32 %v1740, %v1958
        %v1967 = vadd.f32 %v1741, %v1959
        %v1968 = vadd.f32 %v1742, %v1960
        %v1969 = vadd.f32 %v1743, %v1961
        %v1970 = vadd.f32 %v1744, %v1962
        %1971 = vst.msk [vmem:[#allocation4] sm:$0xff] %vm1684, %v1963
        %1972 = vst.msk [vmem:[#allocation4 + $0x8] sm:$0xff] %vm1684, %v1964
        %1973 = vst.msk [vmem:[#allocation4 + $0x10] sm:$0xff] %vm1684, %v1965
        %1974 = vst.msk [vmem:[#allocation4 + $0x18] sm:$0xff] %vm1684, %v1966
        %1975 = vst.msk [vmem:[#allocation4 + $0x20] sm:$0xff] %vm1684, %v1967
        %1976 = vst.msk [vmem:[#allocation4 + $0x28] sm:$0xff] %vm1684, %v1968
        %1977 = vst.msk [vmem:[#allocation4 + $0x30] sm:$0xff] %vm1684, %v1969
        %1978 = vst.msk [vmem:[#allocation4 + $0x38] sm:$0xff] %vm1684, %v1970
        %v1979 = vmul.f32 %v1925, 0.5
        %v1980 = vmul.f32 %v1928, 0.5
        %v1981 = vmul.f32 %v1933, 0.5
        %v1982 = vmul.f32 %v1936, 0.5
        %v1983 = vmul.f32 %v1941, 0.5
        %v1984 = vmul.f32 %v1944, 0.5
        %v1985 = vmul.f32 %v1949, 0.5
        %v1986 = vmul.f32 %v1952, 0.5
        %v1987 = vtanh.pop %v1979
        %v1988 = vtanh.pop %v1980
        %v1989 = vtanh.pop %v1981
        %v1990 = vtanh.pop %v1982
        %v1991 = vtanh.pop %v1983
        %v1992 = vtanh.pop %v1984
        %v1993 = vtanh.pop %v1985
        %v1994 = vtanh.pop %v1986
        %v1995 = vmul.f32 %v1987, 0.5
        %v1996 = vmul.f32 %v1988, 0.5
        %v1997 = vmul.f32 %v1989, 0.5
        %v1998 = vmul.f32 %v1990, 0.5
        %v1999 = vmul.f32 %v1991, 0.5
        %v2000 = vmul.f32 %v1992, 0.5
        %v2001 = vmul.f32 %v1993, 0.5
        %v2002 = vmul.f32 %v1994, 0.5
        %v2003 = vadd.f32 %v1995, 0.5
        %v2004 = vadd.f32 %v1996, 0.5
        %v2005 = vadd.f32 %v1997, 0.5
        %v2006 = vadd.f32 %v1998, 0.5
        %v2007 = vadd.f32 %v1999, 0.5
        %v2008 = vadd.f32 %v2000, 0.5
        %v2009 = vadd.f32 %v2001, 0.5
        %v2010 = vadd.f32 %v2002, 0.5
        %v2011 = vld [vmem:[%s950] sm:$0xff]
        %2013 = vset.pattern.permute.xlu0 0
        %2014 = vperm.xlu0 %2013, %v2011
        %v2015 = vpop.permute.xlu0 %2014
        %v2017 = vmul.f32 %v2003, %v2015
        %v2018 = vmul.f32 %v2004, %v2015
        %v2019 = vmul.f32 %v2005, %v2015
        %v2020 = vmul.f32 %v2006, %v2015
        %v2021 = vmul.f32 %v2007, %v2015
        %v2022 = vmul.f32 %v2008, %v2015
        %v2023 = vmul.f32 %v2009, %v2015
        %v2024 = vmul.f32 %v2010, %v2015
        %2026 = vrot.lane.b32.xlu0 %v1736, 32
        %v2027 = vpop.permute.xlu0 %2026
        %v2029 = vmul.f32 %v2017, %v2027
        %v2030 = vmul.f32 %v2018, %v2027
        %v2031 = vmul.f32 %v2019, %v2027
        %v2032 = vmul.f32 %v2020, %v2027
        %v2033 = vmul.f32 %v2021, %v2027
        %v2034 = vmul.f32 %v2022, %v2027
        %v2035 = vmul.f32 %v2023, %v2027
        %v2036 = vmul.f32 %v2024, %v2027
        %v2037 = vsel %vm1684, %v2029, 0.0
        %v2038 = vrot.slane %v2037, 4
        %v2039 = vadd.f32 %v2037, %v2038
        %v2040 = vrot.slane %v2039, 2
        %v2041 = vadd.f32 %v2039, %v2040
        %v2042 = vrot.slane %v2041, 1
        %v2043 = vadd.f32 %v2041, %v2042
        %v2044 = vsel %vm1684, %v2030, 0.0
        %v2045 = vrot.slane %v2044, 4
        %v2046 = vadd.f32 %v2044, %v2045
        %v2047 = vrot.slane %v2046, 2
        %v2048 = vadd.f32 %v2046, %v2047
        %v2049 = vrot.slane %v2048, 1
        %v2050 = vadd.f32 %v2048, %v2049
        %v2051 = vsel %vm1684, %v2031, 0.0
        %v2052 = vrot.slane %v2051, 4
        %v2053 = vadd.f32 %v2051, %v2052
        %v2054 = vrot.slane %v2053, 2
        %v2055 = vadd.f32 %v2053, %v2054
        %v2056 = vrot.slane %v2055, 1
        %v2057 = vadd.f32 %v2055, %v2056
        %v2058 = vsel %vm1684, %v2032, 0.0
        %v2059 = vrot.slane %v2058, 4
        %v2060 = vadd.f32 %v2058, %v2059
        %v2061 = vrot.slane %v2060, 2
        %v2062 = vadd.f32 %v2060, %v2061
        %v2063 = vrot.slane %v2062, 1
        %v2064 = vadd.f32 %v2062, %v2063
        %v2065 = vsel %vm1684, %v2033, 0.0
        %v2066 = vrot.slane %v2065, 4
        %v2067 = vadd.f32 %v2065, %v2066
        %v2068 = vrot.slane %v2067, 2
        %v2069 = vadd.f32 %v2067, %v2068
        %v2070 = vrot.slane %v2069, 1
        %v2071 = vadd.f32 %v2069, %v2070
        %v2072 = vsel %vm1684, %v2034, 0.0
        %v2073 = vrot.slane %v2072, 4
        %v2074 = vadd.f32 %v2072, %v2073
        %v2075 = vrot.slane %v2074, 2
        %v2076 = vadd.f32 %v2074, %v2075
        %v2077 = vrot.slane %v2076, 1
        %v2078 = vadd.f32 %v2076, %v2077
        %v2079 = vsel %vm1684, %v2035, 0.0
        %v2080 = vrot.slane %v2079, 4
        %v2081 = vadd.f32 %v2079, %v2080
        %v2082 = vrot.slane %v2081, 2
        %v2083 = vadd.f32 %v2081, %v2082
        %v2084 = vrot.slane %v2083, 1
        %v2085 = vadd.f32 %v2083, %v2084
        %v2086 = vsel %vm1684, %v2036, 0.0
        %v2087 = vrot.slane %v2086, 4
        %v2088 = vadd.f32 %v2086, %v2087
        %v2089 = vrot.slane %v2088, 2
        %v2090 = vadd.f32 %v2088, %v2089
        %v2091 = vrot.slane %v2090, 1
        %v2092 = vadd.f32 %v2090, %v2091
        %v2093 = vsel %vm1684, %v2017, 0.0
        %v2094 = vrot.slane %v2093, 4
        %v2095 = vadd.f32 %v2093, %v2094
        %v2096 = vrot.slane %v2095, 2
        %v2097 = vadd.f32 %v2095, %v2096
        %v2098 = vrot.slane %v2097, 1
        %v2099 = vadd.f32 %v2097, %v2098
        %v2100 = vsel %vm1684, %v2018, 0.0
        %v2101 = vrot.slane %v2100, 4
        %v2102 = vadd.f32 %v2100, %v2101
        %v2103 = vrot.slane %v2102, 2
        %v2104 = vadd.f32 %v2102, %v2103
        %v2105 = vrot.slane %v2104, 1
        %v2106 = vadd.f32 %v2104, %v2105
        %v2107 = vsel %vm1684, %v2019, 0.0
        %v2108 = vrot.slane %v2107, 4
        %v2109 = vadd.f32 %v2107, %v2108
        %v2110 = vrot.slane %v2109, 2
        %v2111 = vadd.f32 %v2109, %v2110
        %v2112 = vrot.slane %v2111, 1
        %v2113 = vadd.f32 %v2111, %v2112
        %v2114 = vsel %vm1684, %v2020, 0.0
        %v2115 = vrot.slane %v2114, 4
        %v2116 = vadd.f32 %v2114, %v2115
        %v2117 = vrot.slane %v2116, 2
        %v2118 = vadd.f32 %v2116, %v2117
        %v2119 = vrot.slane %v2118, 1
        %v2120 = vadd.f32 %v2118, %v2119
        %v2121 = vsel %vm1684, %v2021, 0.0
        %v2122 = vrot.slane %v2121, 4
        %v2123 = vadd.f32 %v2121, %v2122
        %v2124 = vrot.slane %v2123, 2
        %v2125 = vadd.f32 %v2123, %v2124
        %v2126 = vrot.slane %v2125, 1
        %v2127 = vadd.f32 %v2125, %v2126
        %v2128 = vsel %vm1684, %v2022, 0.0
        %v2129 = vrot.slane %v2128, 4
        %v2130 = vadd.f32 %v2128, %v2129
        %v2131 = vrot.slane %v2130, 2
        %v2132 = vadd.f32 %v2130, %v2131
        %v2133 = vrot.slane %v2132, 1
        %v2134 = vadd.f32 %v2132, %v2133
        %v2135 = vsel %vm1684, %v2023, 0.0
        %v2136 = vrot.slane %v2135, 4
        %v2137 = vadd.f32 %v2135, %v2136
        %v2138 = vrot.slane %v2137, 2
        %v2139 = vadd.f32 %v2137, %v2138
        %v2140 = vrot.slane %v2139, 1
        %v2141 = vadd.f32 %v2139, %v2140
        %v2142 = vsel %vm1684, %v2024, 0.0
        %v2143 = vrot.slane %v2142, 4
        %v2144 = vadd.f32 %v2142, %v2143
        %v2145 = vrot.slane %v2144, 2
        %v2146 = vadd.f32 %v2144, %v2145
        %v2147 = vrot.slane %v2146, 1
        %v2148 = vadd.f32 %v2146, %v2147
        %v2149 = vadd.f32 %v2099, 1e-20
        %v2150 = vadd.f32 %v2106, 1e-20
        %v2151 = vadd.f32 %v2113, 1e-20
        %v2152 = vadd.f32 %v2120, 1e-20
        %v2153 = vadd.f32 %v2127, 1e-20
        %v2154 = vadd.f32 %v2134, 1e-20
        %v2155 = vadd.f32 %v2141, 1e-20
        %v2156 = vadd.f32 %v2148, 1e-20
        %v2157 = vlaneseq
        %v2158 = vshrl.u32 %v2157, 7
        %v2159 = vsub.s32 1, %v2158
        %v2160 = vrot.slane %v1665, %v2159
        %2162 = vrot.lane.b32.xlu0 %v2160, 64
        %v2163 = vpop.permute.xlu0 %2162
        %v2165 = vadd.f32 %v1723, %v2163
        %v2166 = vrcp.pop %v2149
        %v2167 = vrcp.pop %v2150
        %v2168 = vrcp.pop %v2151
        %v2169 = vrcp.pop %v2152
        %v2170 = vrcp.pop %v2153
        %v2171 = vrcp.pop %v2154
        %v2172 = vrcp.pop %v2155
        %v2173 = vrcp.pop %v2156
        %v2174 = vmul.f32 %v2043, %v2166
        %v2175 = vmul.f32 %v2050, %v2167
        %v2176 = vmul.f32 %v2057, %v2168
        %v2177 = vmul.f32 %v2064, %v2169
        %v2178 = vmul.f32 %v2071, %v2170
        %v2179 = vmul.f32 %v2078, %v2171
        %v2180 = vmul.f32 %v2085, %v2172
        %v2181 = vmul.f32 %v2092, %v2173
        %vm2190 = vcmask 1041409
        %v2191 = vsel %vm2190, %v2175, %v2174
        %vm2192 = vcmask 1042434
        %v2193 = vsel %vm2192, %v2176, %v2191
        %vm2194 = vcmask 1043459
        %v2195 = vsel %vm2194, %v2177, %v2193
        %vm2196 = vcmask 1044484
        %v2197 = vsel %vm2196, %v2178, %v2195
        %vm2198 = vcmask 1045509
        %v2199 = vsel %vm2198, %v2179, %v2197
        %vm2200 = vcmask 1046534
        %v2201 = vsel %vm2200, %v2180, %v2199
        %vm2202 = vcmask 1047559
        %v2203 = vsel %vm2202, %v2181, %v2201
        %2204 = vrot.lane.b32.xlu0 %v2203, 64
        %v2205 = vpop.permute.xlu0 %2204
        %v2207 = vadd.f32 %v2165, %v2205
        %v2208 = vmax.f32 %v2207, 0.0
        %2210 = vrot.lane.b32.xlu0 %v2208, 64
        %v2211 = vpop.permute.xlu0 %2210
        %v2213 = vadd.f32 %v1666, %v2211
        %2214 = vst.msk [vmem:[#allocation3] sm:$0xff] %vm1684, %v2213
        %p2215 = scmp.eq.s32.totalorder %s50, 1
        // Predicated region
        $region117: #{tpu_custom_call.1} parent=87 // pred_check
          %p2216 = pneg %p2215
        $region118: #{tpu_custom_call.1} parent=87 // pred_check_branch
          %2218 = sbr.rel (%p2216) target = $region120
        $region119: #{tpu_custom_call.1} parent=87 // pred_region
          %v2219 = vld [vmem:[#allocation2] sm:$0xff]
          %v2220 = vld [vmem:[#allocation3] sm:$0xff]
          %v2221 = vadd.f32 %v2219, %v2220
          %v2222 = vpack.c.bf16 %v2221, %v2221
          %v2223 = vld [vmem:[%s995] sm:$0xf]
          %v2224 = vld [vmem:[%s995 + $0x4] sm:$0xf]
          %v2225 = vld [vmem:[%s995 + $0x8] sm:$0xf]
          %v2226 = vld [vmem:[%s995 + $0xc] sm:$0xf]
          %v2227 = vld [vmem:[%s998] sm:$0x1]
          %v2229 = vlaneseq
          %v2230 = vshrl.u32 %v2229, 7
          %v2231 = vsub.s32 0, %v2230
          %v2232 = vrot.slane %v2227, %v2231
          %v2238 = vunpack.c.l.b16 %v2223
          %v2239 = vunpack.c.l.b16 %v2224
          %v2240 = vunpack.c.l.b16 %v2225
          %v2241 = vunpack.c.l.b16 %v2226
          %v2242 = vpack.c.b16 %v2239, %v2238
          %v2243 = vpack.c.b16 %v2241, %v2240
          %v2247 = vsel %vm1684, %v2222, 0
          %2249 = vmatprep.subr.bf16.mxu0 0
          %2250 = vmatpush1.bf16.msra.mxu0 0
          %2251 = vmatprep.subr.bf16.mxu0 0
          %2252 = vmatpush1.bf16.msra.mxu0 0
          %2253 = vmatprep.subr.bf16.mxu0 0
          %2254 = vmatpush1.bf16.msra.mxu0 0
          %2255 = vmatprep.subr.bf16.mxu0 0
          %2256 = vmatpush1.bf16.msra.mxu0 0
          %2257 = vmatprep.subr.bf16.mxu0 0
          %2258 = vmatpush1.bf16.msra.mxu0 0
          %2259 = vmatprep.subr.bf16.mxu0 0
          %2260 = vmatpush1.bf16.msra.mxu0 0
          %2261 = vmatprep.subr.bf16.mxu0 0
          %2262 = vmatpush1.bf16.msra.mxu0 %v2243
          %2263 = vmatprep.subr.bf16.mxu0 0
          %2264 = vmatpush1.bf16.msra.mxu0 %v2242
          %2265 = vmatprep.subr.bf16.mxu0 0
          %2266 = vmatpush2.bf16.msra.mxu0 0
          %2267 = vmatprep.subr.bf16.mxu0 0
          %2268 = vmatpush2.bf16.msra.mxu0 0
          %2269 = vmatprep.subr.bf16.mxu0 0
          %2270 = vmatpush2.bf16.msra.mxu0 0
          %2271 = vmatprep.subr.bf16.mxu0 0
          %2272 = vmatpush2.bf16.msra.mxu0 0
          %2273 = vmatprep.subr.bf16.mxu0 0
          %2274 = vmatpush2.bf16.msra.mxu0 0
          %2275 = vmatprep.subr.bf16.mxu0 0
          %2276 = vmatpush2.bf16.msra.mxu0 0
          %2277 = vmatprep.subr.bf16.mxu0 0
          %2278 = vmatpush2.bf16.msra.mxu0 0
          %2279 = vmatprep.subr.bf16.mxu0 0
          %2280 = vmatpush2.bf16.msra.mxu0 0
          %2281 = vmatprep.mubr.bf16.mxu0 0
          %2282 = vmatmul.mubr.bf16.gmra.mxu0 %v2247
          %v2283 = vpop.f32.mrf.mxu0
          %v2284 = vadd.f32 %v2232, %v2283
          %v2285 = vpop.f32.mrf.mxu0
          %v2286 = vpop.f32.mrf.mxu0
          %v2287 = vpop.f32.mrf.mxu0
          %2288 = vdwg.mxu0
          %2289 = vst [vmem:[%s938] sm:$0xff] %v2284
        $region120: #{tpu_custom_call.1} parent=87 // pred_fallthru
          _
        %s2290 = sand.u32 %s517, 1
        %s2291 = scalar_lea.sflag [#allocation7], %s2290
        %s2292 = sand.u32 %s517, 1
        %s2293 = smul.addr %s2292, 8
        %s2294 = scalar_lea.vmem [#allocation16], %s2293
        // Predicated region
        $region121: #{tpu_custom_call.1} parent=87 // pred_check
          %p2295 = pneg %p527
        $region122: #{tpu_custom_call.1} parent=87 // pred_check_branch
          %2297 = sbr.rel (%p2295) target = $region124
        $region123: #{tpu_custom_call.1} parent=87 // pred_region
          %s2299 = ssub.s32 128, 128
          %2300 = vsyncadd %s2291, %s2299
          %s2301 = smul.addr %s48, 2
          %s2302 = sadd.s32 %s49, %s2301
          %s2303 = smul.addr %s2302, 128
          %s2304 = scalar_lea.hbm %s17, %s2303
          %s2306 = sshll.u32 %s2294, 4
          %s2307 = int_to_ptr.vmem [resolvable:$true] %s2306
          %2309 = dma.vmem_to_hbm [thread:$0]  %s2307, 128, %s2304, %s2291
        $region124: #{tpu_custom_call.1} parent=87 // pred_fallthru
          _
      $region88: #{tpu_custom_call.1} parent=5 // pred_fallthru
        _
      %p2310 = scmp.le.s32.totalorder 2, %s38
      // Predicated region
      $region125: #{tpu_custom_call.1} parent=5 // pred_check
        %p2311 = pneg %p2310
      $region126: #{tpu_custom_call.1} parent=5 // pred_check_branch
        %2313 = sbr.rel (%p2311) target = $region128
      $region127: #{tpu_custom_call.1} parent=5 // pred_region
        %s2314 = ssub.s32 %s38, 2
        // Predicated region
        $region129: #{tpu_custom_call.1} parent=127 // pred_check
          %p2315 = pneg %p533
        $region130: #{tpu_custom_call.1} parent=127 // pred_check_branch
          %2317 = sbr.rel (%p2315) target = $region132
        $region131: #{tpu_custom_call.1} parent=127 // pred_region
          %s2318 = sand.u32 %s518, 1
          %s2319 = scalar_lea.sflag [#allocation7], %s2318
          %s2320 = sand.u32 %s518, 1
          %s2321 = smul.addr %s2320, 8
          %s2322 = scalar_lea.vmem [#allocation16], %s2321
          %2323 = dma.done %s2319, 128
        $region132: #{tpu_custom_call.1} parent=127 // pred_fallthru
          _
      $region128: #{tpu_custom_call.1} parent=5 // pred_fallthru
        _
    $region6: #{tpu_custom_call.1} parent=1 // loop_footer
      %s42 = sadd.s32 1, %s38
    $region7: #{tpu_custom_call.1} parent=1 // loop_footer_branch
      %37 = sbr.rel target = $region3
    $region8: #{tpu_custom_call.1} parent=1 // loop_exit
      _
    %2324 = vsyncpa [#allocation6], 1
    %s2325 = scalar_lea.sflag [#allocation6], 1
    %2326 = vsyncpa %s2325, 1
    %2327 = vsyncpa [#allocation9], 1
    %s2328 = scalar_lea.sflag [#allocation9], 1
    %2329 = vsyncpa %s2328, 1
    %2330 = vsyncpa [#allocation12], 1
    %s2331 = scalar_lea.sflag [#allocation12], 1
    %2332 = vsyncpa %s2331, 1
    %2333 = vsyncpa [#allocation15], 1
    %s2334 = scalar_lea.sflag [#allocation15], 1
    %2335 = vsyncpa %s2334, 1
    %2336 = vsyncpa [#allocation7], 1
    %s2337 = scalar_lea.sflag [#allocation7], 1
    %2338 = vsyncpa %s2337, 1

</llo_original>
